<compile_context>
chip_gen: v6e
topology: v6e:2x2x1
jax: 0.10.0
libtpu: 0.0.40
codegen_flags: <defaults>
</compile_context>

<pallas_src>
import functools

import jax
import jax.numpy as jnp
from jax import lax
from jax.experimental import pallas as pl
from jax.experimental.pallas import tpu as pltpu

KH, KW = 6, 8      # kernel_size
SH, SW = 2, 2      # stride
PH, PW = 3, 4      # padding
LANE = 128         # TPU lane width
SUBLANE = 8        # TPU sublane width (f32)


def _out_dim(size, k, s, p):
    # ceil_mode=False -> floor
    return (size + 2 * p - k) // s + 1


def _round_up(v, m):
    return ((v + m - 1) // m) * m


def _avgpool_kernel(x_ref, o_ref, pad_ref, hsum_ref, *,
                    h, w, wo, woff, tho, gh, tnc):
    """Grid: (nc_tiles, gh).
    x_ref:   (h, w, tnc)      input block, resident across the Ho axis
    o_ref:   (tho, wo, tnc)   output block for this Ho tile
    pad_ref: (hp_t, wsc, tnc) local zero-padded slab (VMEM scratch)
    hsum_ref:(tho, wsc, tnc)  staging scratch for the W pass
    """
    hp_t, wsc, _ = pad_ref.shape
    j_dyn = pl.program_id(1)

    # ---- build the LOCAL padded slab for this Ho tile (border-only zeroing,
    #      all offsets/lengths static per tile). -----------------------------
    for j in range(gh):
        g0 = j * tho * SH                       # first padded row of tile j
        a = max(g0, PH)                         # interior rows (global padded)
        b = min(g0 + hp_t, PH + h)
        n_int = b - a

        def build(g0=g0, a=a, n_int=n_int):
            if n_int <= 0:
                pad_ref[...] = jnp.zeros((hp_t, wsc, tnc), jnp.float32)
                return
            lo = a - g0                         # local row of interior start
            if lo > 0:                          # top padding rows
                pad_ref[pl.ds(0, lo), :, :] = (
                    jnp.zeros((lo, wsc, tnc), jnp.float32))
            nb = hp_t - (lo + n_int)
            if nb > 0:                          # bottom padding rows
                pad_ref[pl.ds(lo + n_int, nb), :, :] = (
                    jnp.zeros((nb, wsc, tnc), jnp.float32))
            # left / right column strips of the interior rows
            pad_ref[pl.ds(lo, n_int), pl.ds(0, woff + PW), :] = (
                jnp.zeros((n_int, woff + PW, tnc), jnp.float32))
            nr = wsc - (woff + PW + w)
            if nr > 0:
                pad_ref[pl.ds(lo, n_int), pl.ds(woff + PW + w, nr), :] = (
                    jnp.zeros((n_int, nr, tnc), jnp.float32))
            # interior copy: sublane-aligned column offset -> unmasked stores
            pad_ref[pl.ds(lo, n_int), pl.ds(woff + PW, w), :] = (
                x_ref[pl.ds(a - PH, n_int), :, :].astype(jnp.float32))

        if gh == 1:
            build()
        else:
            pl.when(j_dyn == j)(build)

    # ---- pass 1: sum KH taps along padded-H (stride SH on the leading dim);
    #      taps stream from the slab as strided ref reads, accumulate into
    #      the hsum staging scratch. -----------------------------------------
    hsum_ref[...] = pad_ref[pl.ds(0, tho, stride=SH), :, :]
    for kh in range(1, KH):
        hsum_ref[...] += pad_ref[pl.ds(kh, tho, stride=SH), :, :]

    # ---- pass 2: sum KW taps along W; the stride-2 is handled by sublane-
    #      strided vector loads from the scratch, not XLU shuffles of a live
    #      register value. ---------------------------------------------------
    acc = hsum_ref[:, pl.ds(woff, wo, stride=SW), :]
    for kw in range(1, KW):
        acc = acc + hsum_ref[:, pl.ds(woff + kw, wo, stride=SW), :]

    o_ref[...] = (acc * (1.0 / float(KH * KW))).astype(o_ref.dtype)


def avg_pool2d(x):
    """x: (N, C, H, W) float32 -> (N, C, Ho, Wo) (PyTorch AvgPool2d)."""
    n, c, h, w = x.shape
    nc = n * c
    ho = _out_dim(h, KH, SH, PH)
    wo = _out_dim(w, KW, SW, PW)

    # ---- lane (N*C) tiling --------------------------------------------------
    if nc >= LANE:
        nc_pad = _round_up(nc, LANE)
        tnc = 256 if nc_pad % 256 == 0 else LANE
    else:
        # Small N*C: keep the true nc as the (full-dim) last block dim.  Lane-
        # masked stores, but no jnp.pad and ~16x less HBM traffic.
        nc_pad = nc
        tnc = nc
    nc_tiles = nc_pad // tnc

    # ---- Ho tiling: guarantee >=2 parallel grid steps when a single NC tile
    #      would leave a v7x second TensorCore idle. --------------------------
    if nc_tiles == 1 and ho >= 4:
        gh = 2
        tho = (ho + 1) // 2
    else:
        gh = 1
        tho = ho
    ho_pad = gh * tho            # may exceed ho by < gh rows (sliced off below)

    # ---- scratch geometry ---------------------------------------------------
    woff = (-PW) % SUBLANE                                   # 4 for PW=4
    wp = w + 2 * PW
    wsc = _round_up(woff + wp, SUBLANE)                      # 32 for W=16
    hp_t = SH * (tho - 1) + KH                               # local slab rows

    # NCHW -> (H, W, NC): batch*channel on the lane axis.
    xt = jnp.transpose(x.reshape(nc, h, w), (1, 2, 0))
    if nc_pad != nc:
        xt = jnp.pad(xt, ((0, 0), (0, 0), (0, nc_pad - nc)))

    kernel = functools.partial(_avgpool_kernel, h=h, w=w, wo=wo, woff=woff,
                               tho=tho, gh=gh, tnc=tnc)

    # Rough VMEM/step estimate (lane dim physically padded to 128).
    tnc_phys = _round_up(tnc, LANE)
    vmem_bytes = 4 * (2 * h * w * tnc_phys        # double-buffered input block
                      + 2 * tho * wo * tnc_phys   # double-buffered output block
                      + hp_t * wsc * tnc_phys     # pad slab scratch
                      + tho * wsc * tnc_phys)     # hsum scratch
    cp_kwargs = {"dimension_semantics": ("parallel", "parallel")}
    if vmem_bytes > 12 * 1024 * 1024:
        cp_kwargs["vmem_limit_bytes"] = min(2 * vmem_bytes, 100 * 1024 * 1024)

    out_t = pl.pallas_call(
        kernel,
        out_shape=jax.ShapeDtypeStruct((ho_pad, wo, nc_pad), x.dtype),
        grid_spec=pltpu.PrefetchScalarGridSpec(
            num_scalar_prefetch=0,
            grid=(nc_tiles, gh),
            in_specs=[pl.BlockSpec((h, w, tnc), lambda i, j: (0, 0, i))],
            out_specs=pl.BlockSpec((tho, wo, tnc), lambda i, j: (j, 0, i)),
            scratch_shapes=[pltpu.VMEM((hp_t, wsc, tnc), jnp.float32),
                            pltpu.VMEM((tho, wsc, tnc), jnp.float32)],
        ),
        compiler_params=pltpu.CompilerParams(**cp_kwargs),
        cost_estimate=pl.CostEstimate(
            flops=int(nc_pad) * ho * wo * (KH + KW),
            transcendentals=0,
            bytes_accessed=(h * w + ho * wo) * int(nc_pad) * 4,
        ),
    )(xt)

    out = out_t
    if ho_pad != ho:
        out = out[:ho]                        # drop fake bottom output row(s)
    if nc_pad != nc:
        out = out[:, :, :nc]                  # drop padded channels
    return jnp.transpose(out, (2, 0, 1)).reshape(n, c, ho, wo)


def _reference(x):
    # Pure-JAX reference: reduce_window sum over zero-padded input / (KH*KW)
    summed = lax.reduce_window(
        x, 0.0, lax.add,
        window_dimensions=(1, 1, KH, KW),
        window_strides=(1, 1, SH, SW),
        padding=((0, 0), (0, 0), (PH, PH), (PW, PW)),
    )
    return summed / float(KH * KW)


if __name__ == "__main__":
    key = jax.random.PRNGKey(0)
    x = jax.random.normal(key, (2, 4, 16, 16), dtype=jnp.float32)

    out = jax.jit(avg_pool2d)(x)
    out = jax.block_until_ready(out)

    ref = _reference(x)
    assert out.shape == ref.shape, (out.shape, ref.shape)
    assert jnp.allclose(out, ref, atol=1e-5, rtol=1e-5), "mismatch vs reference"

    print("KERNEL_OK")
</pallas_src>

<mosaic_0001>
module attributes {stable_mosaic.version = 11 : i64} {
  func.func @_avgpool_kernel(%arg0: i32, %arg1: i32, %arg2: memref<16x16x8xf32, #tpu.memory_space<vmem>>, %arg3: memref<5x9x8xf32, #tpu.memory_space<vmem>>, %arg4: memref<14x32x8xf32, #tpu.memory_space<vmem>>, %arg5: memref<5x32x8xf32, #tpu.memory_space<vmem>>) attributes {dimension_semantics = [#tpu.dimension_semantics<parallel>, #tpu.dimension_semantics<parallel>], iteration_bounds = array<i64: 1, 2>, scalar_prefetch = 0 : i64, scratch_operands = 2 : i64, tpu.core_type = #tpu.core_type<tc>, window_params = [{transform_indices = @transform_0, window_bounds = array<i64: 16, 16, 8>}, {transform_indices = @transform_1, window_bounds = array<i64: 5, 9, 8>}]} {
    %c0_i32 = arith.constant 0 : i32
    %0 = arith.cmpi eq, %arg1, %c0_i32 : i32
    %1 = arith.extui %0 : i1 to i32
    %c0_i32_0 = arith.constant 0 : i32
    %2 = arith.cmpi ne, %1, %c0_i32_0 : i32
    scf.if %2 {
      %cst_68 = arith.constant 0.000000e+00 : f32
      %46 = vector.broadcast %cst_68 : f32 to vector<3x32x8xf32>
      %c0_69 = arith.constant 0 : index
      %c0_70 = arith.constant 0 : index
      %c0_71 = arith.constant 0 : index
      %47 = vector.load %arg4[%c0_69, %c0_70, %c0_71] : memref<14x32x8xf32, #tpu.memory_space<vmem>>, vector<3x32x8xf32>
      tpu.vector_store %arg4[%c0_69, %c0_70, %c0_71], %46 {strides = array<i32>} : memref<14x32x8xf32, #tpu.memory_space<vmem>>, vector<3x32x8xf32>,
      %cst_72 = arith.constant 0.000000e+00 : f32
      %48 = vector.broadcast %cst_72 : f32 to vector<11x8x8xf32>
      %c3_73 = arith.constant 3 : index
      %c0_74 = arith.constant 0 : index
      %c0_75 = arith.constant 0 : index
      %49 = vector.load %arg4[%c3_73, %c0_74, %c0_75] : memref<14x32x8xf32, #tpu.memory_space<vmem>>, vector<11x8x8xf32>
      tpu.vector_store %arg4[%c3_73, %c0_74, %c0_75], %48 {strides = array<i32>} : memref<14x32x8xf32, #tpu.memory_space<vmem>>, vector<11x8x8xf32>,
      %cst_76 = arith.constant 0.000000e+00 : f32
      %50 = vector.broadcast %cst_76 : f32 to vector<11x8x8xf32>
      %c3_77 = arith.constant 3 : index
      %c24 = arith.constant 24 : index
      %c0_78 = arith.constant 0 : index
      %51 = vector.load %arg4[%c3_77, %c24, %c0_78] : memref<14x32x8xf32, #tpu.memory_space<vmem>>, vector<11x8x8xf32>
      tpu.vector_store %arg4[%c3_77, %c24, %c0_78], %50 {strides = array<i32>} : memref<14x32x8xf32, #tpu.memory_space<vmem>>, vector<11x8x8xf32>,
      %c0_79 = arith.constant 0 : index
      %c0_80 = arith.constant 0 : index
      %c0_81 = arith.constant 0 : index
      %52 = vector.load %arg2[%c0_79, %c0_80, %c0_81] : memref<16x16x8xf32, #tpu.memory_space<vmem>>, vector<11x16x8xf32>
      %c3_82 = arith.constant 3 : index
      %c8_83 = arith.constant 8 : index
      %c0_84 = arith.constant 0 : index
      %53 = vector.load %arg4[%c3_82, %c8_83, %c0_84] : memref<14x32x8xf32, #tpu.memory_space<vmem>>, vector<11x16x8xf32>
      tpu.vector_store %arg4[%c3_82, %c8_83, %c0_84], %52 {strides = array<i32>} : memref<14x32x8xf32, #tpu.memory_space<vmem>>, vector<11x16x8xf32>,
    } else {
    }
    %c1_i32 = arith.constant 1 : i32
    %3 = arith.cmpi eq, %arg1, %c1_i32 : i32
    %4 = arith.extui %3 : i1 to i32
    %c0_i32_1 = arith.constant 0 : i32
    %5 = arith.cmpi ne, %4, %c0_i32_1 : i32
    scf.if %5 {
      %cst_68 = arith.constant 0.000000e+00 : f32
      %46 = vector.broadcast %cst_68 : f32 to vector<5x32x8xf32>
      %c9_69 = arith.constant 9 : index
      %c0_70 = arith.constant 0 : index
      %c0_71 = arith.constant 0 : index
      %47 = vector.load %arg4[%c9_69, %c0_70, %c0_71] : memref<14x32x8xf32, #tpu.memory_space<vmem>>, vector<5x32x8xf32>
      tpu.vector_store %arg4[%c9_69, %c0_70, %c0_71], %46 {strides = array<i32>} : memref<14x32x8xf32, #tpu.memory_space<vmem>>, vector<5x32x8xf32>,
      %cst_72 = arith.constant 0.000000e+00 : f32
      %48 = vector.broadcast %cst_72 : f32 to vector<9x8x8xf32>
      %c0_73 = arith.constant 0 : index
      %c0_74 = arith.constant 0 : index
      %c0_75 = arith.constant 0 : index
      %49 = vector.load %arg4[%c0_73, %c0_74, %c0_75] : memref<14x32x8xf32, #tpu.memory_space<vmem>>, vector<9x8x8xf32>
      tpu.vector_store %arg4[%c0_73, %c0_74, %c0_75], %48 {strides = array<i32>} : memref<14x32x8xf32, #tpu.memory_space<vmem>>, vector<9x8x8xf32>,
      %cst_76 = arith.constant 0.000000e+00 : f32
      %50 = vector.broadcast %cst_76 : f32 to vector<9x8x8xf32>
      %c0_77 = arith.constant 0 : index
      %c24 = arith.constant 24 : index
      %c0_78 = arith.constant 0 : index
      %51 = vector.load %arg4[%c0_77, %c24, %c0_78] : memref<14x32x8xf32, #tpu.memory_space<vmem>>, vector<9x8x8xf32>
      tpu.vector_store %arg4[%c0_77, %c24, %c0_78], %50 {strides = array<i32>} : memref<14x32x8xf32, #tpu.memory_space<vmem>>, vector<9x8x8xf32>,
      %c7_79 = arith.constant 7 : index
      %c0_80 = arith.constant 0 : index
      %c0_81 = arith.constant 0 : index
      %52 = vector.load %arg2[%c7_79, %c0_80, %c0_81] : memref<16x16x8xf32, #tpu.memory_space<vmem>>, vector<9x16x8xf32>
      %c0_82 = arith.constant 0 : index
      %c8_83 = arith.constant 8 : index
      %c0_84 = arith.constant 0 : index
      %53 = vector.load %arg4[%c0_82, %c8_83, %c0_84] : memref<14x32x8xf32, #tpu.memory_space<vmem>>, vector<9x16x8xf32>
      tpu.vector_store %arg4[%c0_82, %c8_83, %c0_84], %52 {strides = array<i32>} : memref<14x32x8xf32, #tpu.memory_space<vmem>>, vector<9x16x8xf32>,
    } else {
    }
    %c0 = arith.constant 0 : index
    %c0_2 = arith.constant 0 : index
    %c0_3 = arith.constant 0 : index
    %6 = tpu.strided_load %arg4[%c0, %c0_2, %c0_3] {strides = array<i32: 2, 1, 1>} : memref<14x32x8xf32, #tpu.memory_space<vmem>>, vector<5x32x8xf32>
    %c0_4 = arith.constant 0 : index
    %c0_5 = arith.constant 0 : index
    %c0_6 = arith.constant 0 : index
    %7 = vector.load %arg5[%c0_4, %c0_5, %c0_6] : memref<5x32x8xf32, #tpu.memory_space<vmem>>, vector<5x32x8xf32>
    tpu.vector_store %arg5[%c0_4, %c0_5, %c0_6], %6 {strides = array<i32>} : memref<5x32x8xf32, #tpu.memory_space<vmem>>, vector<5x32x8xf32>,
    %c0_7 = arith.constant 0 : index
    %c0_8 = arith.constant 0 : index
    %c0_9 = arith.constant 0 : index
    %8 = vector.load %arg5[%c0_7, %c0_8, %c0_9] : memref<5x32x8xf32, #tpu.memory_space<vmem>>, vector<5x32x8xf32>
    %c1 = arith.constant 1 : index
    %c0_10 = arith.constant 0 : index
    %c0_11 = arith.constant 0 : index
    %9 = tpu.strided_load %arg4[%c1, %c0_10, %c0_11] {strides = array<i32: 2, 1, 1>} : memref<14x32x8xf32, #tpu.memory_space<vmem>>, vector<5x32x8xf32>
    %10 = arith.addf %8, %9 : vector<5x32x8xf32>
    %c0_12 = arith.constant 0 : index
    %c0_13 = arith.constant 0 : index
    %c0_14 = arith.constant 0 : index
    %11 = vector.load %arg5[%c0_12, %c0_13, %c0_14] : memref<5x32x8xf32, #tpu.memory_space<vmem>>, vector<5x32x8xf32>
    tpu.vector_store %arg5[%c0_12, %c0_13, %c0_14], %10 {strides = array<i32>} : memref<5x32x8xf32, #tpu.memory_space<vmem>>, vector<5x32x8xf32>,
    %c0_15 = arith.constant 0 : index
    %c0_16 = arith.constant 0 : index
    %c0_17 = arith.constant 0 : index
    %12 = vector.load %arg5[%c0_15, %c0_16, %c0_17] : memref<5x32x8xf32, #tpu.memory_space<vmem>>, vector<5x32x8xf32>
    %c2 = arith.constant 2 : index
    %c0_18 = arith.constant 0 : index
    %c0_19 = arith.constant 0 : index
    %13 = tpu.strided_load %arg4[%c2, %c0_18, %c0_19] {strides = array<i32: 2, 1, 1>} : memref<14x32x8xf32, #tpu.memory_space<vmem>>, vector<5x32x8xf32>
    %14 = arith.addf %12, %13 : vector<5x32x8xf32>
    %c0_20 = arith.constant 0 : index
    %c0_21 = arith.constant 0 : index
    %c0_22 = arith.constant 0 : index
    %15 = vector.load %arg5[%c0_20, %c0_21, %c0_22] : memref<5x32x8xf32, #tpu.memory_space<vmem>>, vector<5x32x8xf32>
    tpu.vector_store %arg5[%c0_20, %c0_21, %c0_22], %14 {strides = array<i32>} : memref<5x32x8xf32, #tpu.memory_space<vmem>>, vector<5x32x8xf32>,
    %c0_23 = arith.constant 0 : index
    %c0_24 = arith.constant 0 : index
    %c0_25 = arith.constant 0 : index
    %16 = vector.load %arg5[%c0_23, %c0_24, %c0_25] : memref<5x32x8xf32, #tpu.memory_space<vmem>>, vector<5x32x8xf32>
    %c3 = arith.constant 3 : index
    %c0_26 = arith.constant 0 : index
    %c0_27 = arith.constant 0 : index
    %17 = tpu.strided_load %arg4[%c3, %c0_26, %c0_27] {strides = array<i32: 2, 1, 1>} : memref<14x32x8xf32, #tpu.memory_space<vmem>>, vector<5x32x8xf32>
    %18 = arith.addf %16, %17 : vector<5x32x8xf32>
    %c0_28 = arith.constant 0 : index
    %c0_29 = arith.constant 0 : index
    %c0_30 = arith.constant 0 : index
    %19 = vector.load %arg5[%c0_28, %c0_29, %c0_30] : memref<5x32x8xf32, #tpu.memory_space<vmem>>, vector<5x32x8xf32>
    tpu.vector_store %arg5[%c0_28, %c0_29, %c0_30], %18 {strides = array<i32>} : memref<5x32x8xf32, #tpu.memory_space<vmem>>, vector<5x32x8xf32>,
    %c0_31 = arith.constant 0 : index
    %c0_32 = arith.constant 0 : index
    %c0_33 = arith.constant 0 : index
    %20 = vector.load %arg5[%c0_31, %c0_32, %c0_33] : memref<5x32x8xf32, #tpu.memory_space<vmem>>, vector<5x32x8xf32>
    %c4 = arith.constant 4 : index
    %c0_34 = arith.constant 0 : index
    %c0_35 = arith.constant 0 : index
    %21 = tpu.strided_load %arg4[%c4, %c0_34, %c0_35] {strides = array<i32: 2, 1, 1>} : memref<14x32x8xf32, #tpu.memory_space<vmem>>, vector<5x32x8xf32>
    %22 = arith.addf %20, %21 : vector<5x32x8xf32>
    %c0_36 = arith.constant 0 : index
    %c0_37 = arith.constant 0 : index
    %c0_38 = arith.constant 0 : index
    %23 = vector.load %arg5[%c0_36, %c0_37, %c0_38] : memref<5x32x8xf32, #tpu.memory_space<vmem>>, vector<5x32x8xf32>
    tpu.vector_store %arg5[%c0_36, %c0_37, %c0_38], %22 {strides = array<i32>} : memref<5x32x8xf32, #tpu.memory_space<vmem>>, vector<5x32x8xf32>,
    %c0_39 = arith.constant 0 : index
    %c0_40 = arith.constant 0 : index
    %c0_41 = arith.constant 0 : index
    %24 = vector.load %arg5[%c0_39, %c0_40, %c0_41] : memref<5x32x8xf32, #tpu.memory_space<vmem>>, vector<5x32x8xf32>
    %c5 = arith.constant 5 : index
    %c0_42 = arith.constant 0 : index
    %c0_43 = arith.constant 0 : index
    %25 = tpu.strided_load %arg4[%c5, %c0_42, %c0_43] {strides = array<i32: 2, 1, 1>} : memref<14x32x8xf32, #tpu.memory_space<vmem>>, vector<5x32x8xf32>
    %26 = arith.addf %24, %25 : vector<5x32x8xf32>
    %c0_44 = arith.constant 0 : index
    %c0_45 = arith.constant 0 : index
    %c0_46 = arith.constant 0 : index
    %27 = vector.load %arg5[%c0_44, %c0_45, %c0_46] : memref<5x32x8xf32, #tpu.memory_space<vmem>>, vector<5x32x8xf32>
    tpu.vector_store %arg5[%c0_44, %c0_45, %c0_46], %26 {strides = array<i32>} : memref<5x32x8xf32, #tpu.memory_space<vmem>>, vector<5x32x8xf32>,
    %c0_47 = arith.constant 0 : index
    %c4_48 = arith.constant 4 : index
    %c0_49 = arith.constant 0 : index
    %28 = tpu.strided_load %arg5[%c0_47, %c4_48, %c0_49] {strides = array<i32: 1, 2, 1>} : memref<5x32x8xf32, #tpu.memory_space<vmem>>, vector<5x9x8xf32>
    %c0_50 = arith.constant 0 : index
    %c5_51 = arith.constant 5 : index
    %c0_52 = arith.constant 0 : index
    %29 = tpu.strided_load %arg5[%c0_50, %c5_51, %c0_52] {strides = array<i32: 1, 2, 1>} : memref<5x32x8xf32, #tpu.memory_space<vmem>>, vector<5x9x8xf32>
    %30 = arith.addf %28, %29 : vector<5x9x8xf32>
    %c0_53 = arith.constant 0 : index
    %c6 = arith.constant 6 : index
    %c0_54 = arith.constant 0 : index
    %31 = tpu.strided_load %arg5[%c0_53, %c6, %c0_54] {strides = array<i32: 1, 2, 1>} : memref<5x32x8xf32, #tpu.memory_space<vmem>>, vector<5x9x8xf32>
    %32 = arith.addf %30, %31 : vector<5x9x8xf32>
    %c0_55 = arith.constant 0 : index
    %c7 = arith.constant 7 : index
    %c0_56 = arith.constant 0 : index
    %33 = tpu.strided_load %arg5[%c0_55, %c7, %c0_56] {strides = array<i32: 1, 2, 1>} : memref<5x32x8xf32, #tpu.memory_space<vmem>>, vector<5x9x8xf32>
    %34 = arith.addf %32, %33 : vector<5x9x8xf32>
    %c0_57 = arith.constant 0 : index
    %c8 = arith.constant 8 : index
    %c0_58 = arith.constant 0 : index
    %35 = tpu.strided_load %arg5[%c0_57, %c8, %c0_58] {strides = array<i32: 1, 2, 1>} : memref<5x32x8xf32, #tpu.memory_space<vmem>>, vector<5x9x8xf32>
    %36 = arith.addf %34, %35 : vector<5x9x8xf32>
    %c0_59 = arith.constant 0 : index
    %c9 = arith.constant 9 : index
    %c0_60 = arith.constant 0 : index
    %37 = tpu.strided_load %arg5[%c0_59, %c9, %c0_60] {strides = array<i32: 1, 2, 1>} : memref<5x32x8xf32, #tpu.memory_space<vmem>>, vector<5x9x8xf32>
    %38 = arith.addf %36, %37 : vector<5x9x8xf32>
    %c0_61 = arith.constant 0 : index
    %c10 = arith.constant 10 : index
    %c0_62 = arith.constant 0 : index
    %39 = tpu.strided_load %arg5[%c0_61, %c10, %c0_62] {strides = array<i32: 1, 2, 1>} : memref<5x32x8xf32, #tpu.memory_space<vmem>>, vector<5x9x8xf32>
    %40 = arith.addf %38, %39 : vector<5x9x8xf32>
    %c0_63 = arith.constant 0 : index
    %c11 = arith.constant 11 : index
    %c0_64 = arith.constant 0 : index
    %41 = tpu.strided_load %arg5[%c0_63, %c11, %c0_64] {strides = array<i32: 1, 2, 1>} : memref<5x32x8xf32, #tpu.memory_space<vmem>>, vector<5x9x8xf32>
    %42 = arith.addf %40, %41 : vector<5x9x8xf32>
    %cst = arith.constant 0.020833334 : f32
    %43 = vector.broadcast %cst : f32 to vector<5x9x8xf32>
    %44 = arith.mulf %42, %43 : vector<5x9x8xf32>
    %c0_65 = arith.constant 0 : index
    %c0_66 = arith.constant 0 : index
    %c0_67 = arith.constant 0 : index
    %45 = vector.load %arg3[%c0_65, %c0_66, %c0_67] : memref<5x9x8xf32, #tpu.memory_space<vmem>>, vector<5x9x8xf32>
    tpu.vector_store %arg3[%c0_65, %c0_66, %c0_67], %44 {strides = array<i32>} : memref<5x9x8xf32, #tpu.memory_space<vmem>>, vector<5x9x8xf32>,
    return
  }
  func.func @transform_0(%arg0: i32, %arg1: i32) -> (i32, i32, i32) {
    %c0_i32 = arith.constant 0 : i32
    %c0_i32_0 = arith.constant 0 : i32
    %c0_i32_1 = arith.constant 0 : i32
    return %c0_i32, %c0_i32_0, %arg0 : i32, i32, i32
  }
  func.func @transform_1(%arg0: i32, %arg1: i32) -> (i32, i32, i32) {
    %c0_i32 = arith.constant 0 : i32
    %c0_i32_0 = arith.constant 0 : i32
    return %arg1, %c0_i32, %arg0 : i32, i32, i32
  }
}

</mosaic_0001>

<llo_original>
// kernel: avg_pool2d.1
$region0: #{avg_pool2d.1}
  #allocation0 [shape = 'u32[]', space=smem, size = 0x4, offset = 0x4, fixed_abs, tag = 'smem constant byte address 0x4 - core index']
  #allocation1 [shape = 'u32[144,128]{1,0:T(1,128)}', space=vmem, size = 0x12000, scoped, tag = 'internal scratch']
  #allocation2 [shape = 'f32[14,32,8]{2,1,0:T(8,128)}', space=vmem, size = 0x38000, scoped, tag = 'scratch operand']
  #allocation3 [shape = 'f32[5,32,8]{2,1,0:T(8,128)}', space=vmem, size = 0x14000, scoped, tag = 'scratch operand']
  %s0 = inlined_call_operand.vmem [shape: f32[16,16,8], index: 0, kind: input, shape index: {}]
  %s1 = inlined_call_operand.vmem [shape: f32[10,9,8], index: 1, kind: output, shape index: {}]
  %s2 = sld [smem:[#allocation0]]
  $region45: #{avg_pool2d.1} parent=0
    _
  %s4 = ssub.s32 1, %s2
  %s5 = scalar_select 0, %s4, %s2
  loop: start=0, step=1, limit=4
  $region2: #{avg_pool2d.1} parent=0 // loop_pre_header
    _
  $region3: #{avg_pool2d.1} parent=0 // loop_header
    %s7 = sphi 0, %s11
    %p8 = scmp.ge.s32.totalorder %s7, 4
    %s14 = sphi 0, %s26
    %s15 = sphi 0, %s22
    %s16 = sphi 0, %s14
    %s17 = sphi 0, %s15
    %s18 = sphi 0, %s16
    %s19 = sphi 0, %s17
    %s29 = sphi 0, %s31
    %s32 = sphi 0, %s29
    %s33 = sphi 0, %s32
    %s49 = sphi 0, %s33
    %s57 = sphi 0, %s59
    %s60 = sphi 0, %s57
    %s61 = sphi 0, %s60
    %s77 = sphi 0, %s61
  $region4: #{avg_pool2d.1} parent=0 // loop_header_branch
    %10 = sbr.rel (%p8) target = $region8
  $region5: #{avg_pool2d.1} parent=0 // loop_body
    %s12 = ssub.s32 %s7, 1
    %s13 = ssub.s32 %s7, 2
    %s20 = sadd.s32 1, %s15
    %p21 = scmp.ge.s32.totalorder %s20, 2
    %s22 = scalar_select %p21, 0, %s20
    %s23 = sadd.s32 1, %s14
    %s24 = scalar_select %p21, %s23, %s14
    %p25 = scmp.ge.s32.totalorder %s24, 1
    %s26 = scalar_select %p25, 0, %s24
    %s27 = ssub.s32 %s14, %s26
    %p28 = scmp.eq.s32.totalorder %s27, 0
    %s30 = sadd.s32 %s29, 1
    %s31 = scalar_select %p28, %s29, %s30
    %p34 = pneg %p28
    %p35 = scmp.eq.s32.totalorder %s7, 1
    %p36 = por %p34, %p35
    %p37 = scmp.ne.s32.totalorder %s29, %s32
    %p38 = scmp.eq.s32.totalorder %s7, 0
    %p39 = por %p37, %p38
    %p40 = scmp.ne.s32.totalorder %s29, %s32
    %p41 = scmp.eq.s32.totalorder %s12, 1
    %p42 = por %p40, %p41
    %p43 = scmp.ne.s32.totalorder %s32, %s33
    %p44 = scmp.eq.s32.totalorder %s12, 0
    %p45 = por %p43, %p44
    %p46 = scmp.ne.s32.totalorder %s32, %s33
    %p47 = scmp.eq.s32.totalorder %s13, 1
    %p48 = por %p46, %p47
    %p50 = scmp.ne.s32.totalorder %s33, %s49
    %p51 = scmp.eq.s32.totalorder %s13, 0
    %p52 = por %p50, %p51
    %s53 = ssub.s32 %s15, %s22
    %s54 = ssub.s32 %s14, %s26
    %s55 = sor.u32 %s53, %s54
    %p56 = scmp.eq.s32.totalorder %s55, 0
    %s58 = sadd.s32 %s57, 1
    %s59 = scalar_select %p56, %s57, %s58
    %p62 = pneg %p56
    %p63 = scmp.eq.s32.totalorder %s7, 1
    %p64 = por %p62, %p63
    %p65 = scmp.ne.s32.totalorder %s57, %s60
    %p66 = scmp.eq.s32.totalorder %s7, 0
    %p67 = por %p65, %p66
    %p68 = scmp.ne.s32.totalorder %s57, %s60
    %p69 = scmp.eq.s32.totalorder %s12, 1
    %p70 = por %p68, %p69
    %p71 = scmp.ne.s32.totalorder %s60, %s61
    %p72 = scmp.eq.s32.totalorder %s12, 0
    %p73 = por %p71, %p72
    %p74 = scmp.ne.s32.totalorder %s60, %s61
    %p75 = scmp.eq.s32.totalorder %s13, 1
    %p76 = por %p74, %p75
    %p78 = scmp.ne.s32.totalorder %s61, %s77
    %p79 = scmp.eq.s32.totalorder %s13, 0
    %p80 = por %p78, %p79
    %p81 = scmp.le.s32.totalorder 1, %s7
    %p82 = scmp.lt.s32.totalorder %s7, 3
    %p83 = pnand %p81, %p82
    %p84 = pneg %p83
    // Predicated region
    $region9: #{avg_pool2d.1} parent=5 // pred_check
      _
    $region10: #{avg_pool2d.1} parent=5 // pred_check_branch
      %86 = sbr.rel (%p83) target = $region12
    $region11: #{avg_pool2d.1} parent=5 // pred_region
      %s87 = ssub.s32 %s7, 1
      // Predicated region
      $region13: #{avg_pool2d.1} parent=11 // pred_check
        %p88 = pneg %p45
      $region14: #{avg_pool2d.1} parent=11 // pred_check_branch
        %90 = sbr.rel (%p88) target = $region16
      $region15: #{avg_pool2d.1} parent=11 // pred_region
        %p91 = scmp.lt.s32.totalorder %s16, 0
        %s92 = scalar_select %p91, %s16, 0
        %s93 = smul.addr %s92, 8
        %s94 = scalar_lea.vmem %s0, %s93
      $region16: #{avg_pool2d.1} parent=11 // pred_fallthru
        _
    $region12: #{avg_pool2d.1} parent=5 // pred_fallthru
      _
    %p95 = scmp.lt.s32.totalorder %s7, 2
    // Predicated region
    $region17: #{avg_pool2d.1} parent=5 // pred_check
      %p96 = pneg %p95
    $region18: #{avg_pool2d.1} parent=5 // pred_check_branch
      %98 = sbr.rel (%p96) target = $region20
    $region19: #{avg_pool2d.1} parent=5 // pred_region
      _
    $region20: #{avg_pool2d.1} parent=5 // pred_fallthru
      _
    %p99 = scmp.le.s32.totalorder 1, %s7
    %p100 = scmp.lt.s32.totalorder %s7, 3
    %p101 = pnand %p99, %p100
    %p102 = pneg %p101
    // Predicated region
    $region21: #{avg_pool2d.1} parent=5 // pred_check
      _
    $region22: #{avg_pool2d.1} parent=5 // pred_check_branch
      %104 = sbr.rel (%p101) target = $region24
    $region23: #{avg_pool2d.1} parent=5 // pred_region
      %s105 = ssub.s32 %s7, 1
      %p106 = scmp.lt.s32.totalorder %s16, 0
      %s107 = scalar_select %p106, %s16, 0
      %s108 = smul.addr %s107, 8
      %s109 = scalar_lea.vmem %s0, %s108
      %p110 = pneg %p45
      %p111 = pneg %p42
      %p112 = pneg %p73
      %p113 = pneg %p70
      %s114 = smul.u32 5, %s17
      %p115 = scmp.lt.s32.totalorder %s114, 9
      %s116 = scalar_select %p115, %s114, 9
      %p117 = scmp.lt.s32.totalorder %s16, 0
      %s118 = scalar_select %p117, %s16, 0
      %s119 = smul.addr %s116, 2
      %s120 = sadd.s32 %s118, %s119
      %s121 = smul.addr %s120, 8
      %s122 = scalar_lea.vmem %s1, %s121
      %p123 = scmp.lt.s32.totalorder %s16, 0
      %s124 = scalar_select %p123, %s16, 0
      %s125 = smul.addr %s124, 8
      %s126 = scalar_lea.vmem %s0, %s125
      %s127 = smul.u32 5, %s17
      %p128 = scmp.lt.s32.totalorder %s127, 9
      %s129 = scalar_select %p128, %s127, 9
      %p130 = scmp.lt.s32.totalorder %s16, 0
      %s131 = scalar_select %p130, %s16, 0
      %s132 = smul.addr %s129, 2
      %s133 = sadd.s32 %s131, %s132
      %s134 = smul.addr %s133, 8
      %s135 = scalar_lea.vmem %s1, %s134
      %s136 = smul.u32 5, %s17
      %p137 = scmp.eq.s32.totalorder %s17, 0
      // Predicated region
      $region25: #{avg_pool2d.1} parent=23 // pred_check
        %p138 = pneg %p137
      $region26: #{avg_pool2d.1} parent=23 // pred_check_branch
        %140 = sbr.rel (%p138) target = $region28
      $region27: #{avg_pool2d.1} parent=23 // pred_region
        %vm141 = vcmask 64512
        %142 = vst.msk [vmem:[#allocation2] sm:$0xff] %vm141, 0.0
        %143 = vst.msk [vmem:[#allocation2 + $0x8] sm:$0xff] %vm141, 0.0
        %144 = vst.msk [vmem:[#allocation2 + $0x10] sm:$0xff] %vm141, 0.0
        %145 = vst.msk [vmem:[#allocation2 + $0x18] sm:$0xff] %vm141, 0.0
        %146 = vst.msk [vmem:[#allocation2 + $0x20] sm:$0xff] %vm141, 0.0
        %147 = vst.msk [vmem:[#allocation2 + $0x28] sm:$0xff] %vm141, 0.0
        %148 = vst.msk [vmem:[#allocation2 + $0x30] sm:$0xff] %vm141, 0.0
        %149 = vst.msk [vmem:[#allocation2 + $0x38] sm:$0xff] %vm141, 0.0
        %150 = vst.msk [vmem:[#allocation2 + $0x40] sm:$0xff] %vm141, 0.0
        %151 = vst.msk [vmem:[#allocation2 + $0x48] sm:$0xff] %vm141, 0.0
        %152 = vst.msk [vmem:[#allocation2 + $0x50] sm:$0xff] %vm141, 0.0
        %153 = vst.msk [vmem:[#allocation2 + $0x58] sm:$0xff] %vm141, 0.0
        %s154 = scalar_lea.vmem [#allocation2], 96
        %155 = vst.msk [vmem:[%s154] sm:$0xff] %vm141, 0.0
        %156 = vst.msk [vmem:[%s154 + $0x20] sm:$0xff] %vm141, 0.0
        %157 = vst.msk [vmem:[%s154 + $0x40] sm:$0xff] %vm141, 0.0
        %158 = vst.msk [vmem:[%s154 + $0x60] sm:$0xff] %vm141, 0.0
        %159 = vst.msk [vmem:[%s154 + $0x80] sm:$0xff] %vm141, 0.0
        %160 = vst.msk [vmem:[%s154 + $0xa0] sm:$0xff] %vm141, 0.0
        %161 = vst.msk [vmem:[%s154 + $0xc0] sm:$0xff] %vm141, 0.0
        %162 = vst.msk [vmem:[%s154 + $0xe0] sm:$0xff] %vm141, 0.0
        %163 = vst.msk [vmem:[%s154 + $0x100] sm:$0xff] %vm141, 0.0
        %164 = vst.msk [vmem:[%s154 + $0x120] sm:$0xff] %vm141, 0.0
        %165 = vst.msk [vmem:[%s154 + $0x140] sm:$0xff] %vm141, 0.0
        %166 = vst.msk [vmem:[%s154 + $0x18] sm:$0xff] %vm141, 0.0
        %167 = vst.msk [vmem:[%s154 + $0x38] sm:$0xff] %vm141, 0.0
        %168 = vst.msk [vmem:[%s154 + $0x58] sm:$0xff] %vm141, 0.0
        %169 = vst.msk [vmem:[%s154 + $0x78] sm:$0xff] %vm141, 0.0
        %170 = vst.msk [vmem:[%s154 + $0x98] sm:$0xff] %vm141, 0.0
        %171 = vst.msk [vmem:[%s154 + $0xb8] sm:$0xff] %vm141, 0.0
        %172 = vst.msk [vmem:[%s154 + $0xd8] sm:$0xff] %vm141, 0.0
        %173 = vst.msk [vmem:[%s154 + $0xf8] sm:$0xff] %vm141, 0.0
        %174 = vst.msk [vmem:[%s154 + $0x118] sm:$0xff] %vm141, 0.0
        %175 = vst.msk [vmem:[%s154 + $0x138] sm:$0xff] %vm141, 0.0
        %176 = vst.msk [vmem:[%s154 + $0x158] sm:$0xff] %vm141, 0.0
        %v177 = vld [vmem:[%s126] sm:$0xff]
        %v178 = vld [vmem:[%s126 + $0x8] sm:$0xff]
        %v179 = vld [vmem:[%s126 + $0x10] sm:$0xff]
        %v180 = vld [vmem:[%s126 + $0x18] sm:$0xff]
        %v181 = vld [vmem:[%s126 + $0x20] sm:$0xff]
        %v182 = vld [vmem:[%s126 + $0x28] sm:$0xff]
        %v183 = vld [vmem:[%s126 + $0x30] sm:$0xff]
        %v184 = vld [vmem:[%s126 + $0x38] sm:$0xff]
        %v185 = vld [vmem:[%s126 + $0x40] sm:$0xff]
        %v186 = vld [vmem:[%s126 + $0x48] sm:$0xff]
        %v187 = vld [vmem:[%s126 + $0x50] sm:$0xff]
        %v188 = vld [vmem:[%s126 + $0x58] sm:$0xff]
        %v189 = vld [vmem:[%s126 + $0x60] sm:$0xff]
        %v190 = vld [vmem:[%s126 + $0x68] sm:$0xff]
        %v191 = vld [vmem:[%s126 + $0x70] sm:$0xff]
        %v192 = vld [vmem:[%s126 + $0x78] sm:$0xff]
        %v193 = vld [vmem:[%s126 + $0x80] sm:$0xff]
        %v194 = vld [vmem:[%s126 + $0x88] sm:$0xff]
        %v195 = vld [vmem:[%s126 + $0x90] sm:$0xff]
        %v196 = vld [vmem:[%s126 + $0x98] sm:$0xff]
        %v197 = vld [vmem:[%s126 + $0xa0] sm:$0xff]
        %v198 = vld [vmem:[%s126 + $0xa8] sm:$0xff]
        %199 = vst.msk [vmem:[%s154 + $0x8] sm:$0xff] %vm141, %v177
        %200 = vst.msk [vmem:[%s154 + $0x10] sm:$0xff] %vm141, %v178
        %201 = vst.msk [vmem:[%s154 + $0x28] sm:$0xff] %vm141, %v179
        %202 = vst.msk [vmem:[%s154 + $0x30] sm:$0xff] %vm141, %v180
        %203 = vst.msk [vmem:[%s154 + $0x48] sm:$0xff] %vm141, %v181
        %204 = vst.msk [vmem:[%s154 + $0x50] sm:$0xff] %vm141, %v182
        %205 = vst.msk [vmem:[%s154 + $0x68] sm:$0xff] %vm141, %v183
        %206 = vst.msk [vmem:[%s154 + $0x70] sm:$0xff] %vm141, %v184
        %207 = vst.msk [vmem:[%s154 + $0x88] sm:$0xff] %vm141, %v185
        %208 = vst.msk [vmem:[%s154 + $0x90] sm:$0xff] %vm141, %v186
        %209 = vst.msk [vmem:[%s154 + $0xa8] sm:$0xff] %vm141, %v187
        %210 = vst.msk [vmem:[%s154 + $0xb0] sm:$0xff] %vm141, %v188
        %211 = vst.msk [vmem:[%s154 + $0xc8] sm:$0xff] %vm141, %v189
        %212 = vst.msk [vmem:[%s154 + $0xd0] sm:$0xff] %vm141, %v190
        %213 = vst.msk [vmem:[%s154 + $0xe8] sm:$0xff] %vm141, %v191
        %214 = vst.msk [vmem:[%s154 + $0xf0] sm:$0xff] %vm141, %v192
        %215 = vst.msk [vmem:[%s154 + $0x108] sm:$0xff] %vm141, %v193
        %216 = vst.msk [vmem:[%s154 + $0x110] sm:$0xff] %vm141, %v194
        %217 = vst.msk [vmem:[%s154 + $0x128] sm:$0xff] %vm141, %v195
        %218 = vst.msk [vmem:[%s154 + $0x130] sm:$0xff] %vm141, %v196
        %219 = vst.msk [vmem:[%s154 + $0x148] sm:$0xff] %vm141, %v197
        %220 = vst.msk [vmem:[%s154 + $0x150] sm:$0xff] %vm141, %v198
      $region28: #{avg_pool2d.1} parent=23 // pred_fallthru
        _
      %p221 = scmp.eq.s32.totalorder %s17, 1
      // Predicated region
      $region29: #{avg_pool2d.1} parent=23 // pred_check
        %p222 = pneg %p221
      $region30: #{avg_pool2d.1} parent=23 // pred_check_branch
        %224 = sbr.rel (%p222) target = $region32
      $region31: #{avg_pool2d.1} parent=23 // pred_region
        %s225 = scalar_lea.vmem [#allocation2], 288
        %vm226 = vcmask 64512
        %227 = vst.msk [vmem:[%s225] sm:$0xff] %vm226, 0.0
        %228 = vst.msk [vmem:[%s225 + $0x8] sm:$0xff] %vm226, 0.0
        %229 = vst.msk [vmem:[%s225 + $0x10] sm:$0xff] %vm226, 0.0
        %230 = vst.msk [vmem:[%s225 + $0x18] sm:$0xff] %vm226, 0.0
        %231 = vst.msk [vmem:[%s225 + $0x20] sm:$0xff] %vm226, 0.0
        %232 = vst.msk [vmem:[%s225 + $0x28] sm:$0xff] %vm226, 0.0
        %233 = vst.msk [vmem:[%s225 + $0x30] sm:$0xff] %vm226, 0.0
        %234 = vst.msk [vmem:[%s225 + $0x38] sm:$0xff] %vm226, 0.0
        %235 = vst.msk [vmem:[%s225 + $0x40] sm:$0xff] %vm226, 0.0
        %236 = vst.msk [vmem:[%s225 + $0x48] sm:$0xff] %vm226, 0.0
        %237 = vst.msk [vmem:[%s225 + $0x50] sm:$0xff] %vm226, 0.0
        %238 = vst.msk [vmem:[%s225 + $0x58] sm:$0xff] %vm226, 0.0
        %239 = vst.msk [vmem:[%s225 + $0x60] sm:$0xff] %vm226, 0.0
        %240 = vst.msk [vmem:[%s225 + $0x68] sm:$0xff] %vm226, 0.0
        %241 = vst.msk [vmem:[%s225 + $0x70] sm:$0xff] %vm226, 0.0
        %242 = vst.msk [vmem:[%s225 + $0x78] sm:$0xff] %vm226, 0.0
        %243 = vst.msk [vmem:[%s225 + $0x80] sm:$0xff] %vm226, 0.0
        %244 = vst.msk [vmem:[%s225 + $0x88] sm:$0xff] %vm226, 0.0
        %245 = vst.msk [vmem:[%s225 + $0x90] sm:$0xff] %vm226, 0.0
        %246 = vst.msk [vmem:[%s225 + $0x98] sm:$0xff] %vm226, 0.0
        %247 = vst.msk [vmem:[#allocation2] sm:$0xff] %vm226, 0.0
        %248 = vst.msk [vmem:[#allocation2 + $0x20] sm:$0xff] %vm226, 0.0
        %249 = vst.msk [vmem:[#allocation2 + $0x40] sm:$0xff] %vm226, 0.0
        %250 = vst.msk [vmem:[#allocation2 + $0x60] sm:$0xff] %vm226, 0.0
        %251 = vst.msk [vmem:[#allocation2 + $0x80] sm:$0xff] %vm226, 0.0
        %252 = vst.msk [vmem:[#allocation2 + $0xa0] sm:$0xff] %vm226, 0.0
        %253 = vst.msk [vmem:[#allocation2 + $0xc0] sm:$0xff] %vm226, 0.0
        %254 = vst.msk [vmem:[#allocation2 + $0xe0] sm:$0xff] %vm226, 0.0
        %255 = vst.msk [vmem:[#allocation2 + $0x100] sm:$0xff] %vm226, 0.0
        %256 = vst.msk [vmem:[#allocation2 + $0x18] sm:$0xff] %vm226, 0.0
        %257 = vst.msk [vmem:[#allocation2 + $0x38] sm:$0xff] %vm226, 0.0
        %258 = vst.msk [vmem:[#allocation2 + $0x58] sm:$0xff] %vm226, 0.0
        %259 = vst.msk [vmem:[#allocation2 + $0x78] sm:$0xff] %vm226, 0.0
        %260 = vst.msk [vmem:[#allocation2 + $0x98] sm:$0xff] %vm226, 0.0
        %261 = vst.msk [vmem:[#allocation2 + $0xb8] sm:$0xff] %vm226, 0.0
        %262 = vst.msk [vmem:[#allocation2 + $0xd8] sm:$0xff] %vm226, 0.0
        %263 = vst.msk [vmem:[#allocation2 + $0xf8] sm:$0xff] %vm226, 0.0
        %264 = vst.msk [vmem:[#allocation2 + $0x118] sm:$0xff] %vm226, 0.0
        %s265 = scalar_lea.vmem %s126, 112
        %v266 = vld [vmem:[%s265] sm:$0xff]
        %v267 = vld [vmem:[%s265 + $0x8] sm:$0xff]
        %v268 = vld [vmem:[%s265 + $0x10] sm:$0xff]
        %v269 = vld [vmem:[%s265 + $0x18] sm:$0xff]
        %v270 = vld [vmem:[%s265 + $0x20] sm:$0xff]
        %v271 = vld [vmem:[%s265 + $0x28] sm:$0xff]
        %v272 = vld [vmem:[%s265 + $0x30] sm:$0xff]
        %v273 = vld [vmem:[%s265 + $0x38] sm:$0xff]
        %v274 = vld [vmem:[%s265 + $0x40] sm:$0xff]
        %v275 = vld [vmem:[%s265 + $0x48] sm:$0xff]
        %v276 = vld [vmem:[%s265 + $0x50] sm:$0xff]
        %v277 = vld [vmem:[%s265 + $0x58] sm:$0xff]
        %v278 = vld [vmem:[%s265 + $0x60] sm:$0xff]
        %v279 = vld [vmem:[%s265 + $0x68] sm:$0xff]
        %v280 = vld [vmem:[%s265 + $0x70] sm:$0xff]
        %v281 = vld [vmem:[%s265 + $0x78] sm:$0xff]
        %v282 = vld [vmem:[%s265 + $0x80] sm:$0xff]
        %v283 = vld [vmem:[%s265 + $0x88] sm:$0xff]
        %284 = vst.msk [vmem:[#allocation2 + $0x8] sm:$0xff] %vm226, %v266
        %285 = vst.msk [vmem:[#allocation2 + $0x10] sm:$0xff] %vm226, %v267
        %286 = vst.msk [vmem:[#allocation2 + $0x28] sm:$0xff] %vm226, %v268
        %287 = vst.msk [vmem:[#allocation2 + $0x30] sm:$0xff] %vm226, %v269
        %288 = vst.msk [vmem:[#allocation2 + $0x48] sm:$0xff] %vm226, %v270
        %289 = vst.msk [vmem:[#allocation2 + $0x50] sm:$0xff] %vm226, %v271
        %290 = vst.msk [vmem:[#allocation2 + $0x68] sm:$0xff] %vm226, %v272
        %291 = vst.msk [vmem:[#allocation2 + $0x70] sm:$0xff] %vm226, %v273
        %292 = vst.msk [vmem:[#allocation2 + $0x88] sm:$0xff] %vm226, %v274
        %293 = vst.msk [vmem:[#allocation2 + $0x90] sm:$0xff] %vm226, %v275
        %294 = vst.msk [vmem:[#allocation2 + $0xa8] sm:$0xff] %vm226, %v276
        %295 = vst.msk [vmem:[#allocation2 + $0xb0] sm:$0xff] %vm226, %v277
        %296 = vst.msk [vmem:[#allocation2 + $0xc8] sm:$0xff] %vm226, %v278
        %297 = vst.msk [vmem:[#allocation2 + $0xd0] sm:$0xff] %vm226, %v279
        %298 = vst.msk [vmem:[#allocation2 + $0xe8] sm:$0xff] %vm226, %v280
        %299 = vst.msk [vmem:[#allocation2 + $0xf0] sm:$0xff] %vm226, %v281
        %300 = vst.msk [vmem:[#allocation2 + $0x108] sm:$0xff] %vm226, %v282
        %301 = vst.msk [vmem:[#allocation2 + $0x110] sm:$0xff] %vm226, %v283
      $region32: #{avg_pool2d.1} parent=23 // pred_fallthru
        _
      %v302 = vld [vmem:[#allocation2] sm:$0xff]
      %v303 = vld [vmem:[#allocation2 + $0x8] sm:$0xff]
      %v304 = vld [vmem:[#allocation2 + $0x10] sm:$0xff]
      %v305 = vld [vmem:[#allocation2 + $0x18] sm:$0xff]
      %v306 = vld [vmem:[#allocation2 + $0x40] sm:$0xff]
      %v307 = vld [vmem:[#allocation2 + $0x48] sm:$0xff]
      %v308 = vld [vmem:[#allocation2 + $0x50] sm:$0xff]
      %v309 = vld [vmem:[#allocation2 + $0x58] sm:$0xff]
      %v310 = vld [vmem:[#allocation2 + $0x80] sm:$0xff]
      %v311 = vld [vmem:[#allocation2 + $0x88] sm:$0xff]
      %v312 = vld [vmem:[#allocation2 + $0x90] sm:$0xff]
      %v313 = vld [vmem:[#allocation2 + $0x98] sm:$0xff]
      %v314 = vld [vmem:[#allocation2 + $0xc0] sm:$0xff]
      %v315 = vld [vmem:[#allocation2 + $0xc8] sm:$0xff]
      %v316 = vld [vmem:[#allocation2 + $0xd0] sm:$0xff]
      %v317 = vld [vmem:[#allocation2 + $0xd8] sm:$0xff]
      %v318 = vld [vmem:[#allocation2 + $0x100] sm:$0xff]
      %v319 = vld [vmem:[#allocation2 + $0x108] sm:$0xff]
      %v320 = vld [vmem:[#allocation2 + $0x110] sm:$0xff]
      %v321 = vld [vmem:[#allocation2 + $0x118] sm:$0xff]
      %vm322 = vcmask 64512
      %323 = vst.msk [vmem:[#allocation3] sm:$0xff] %vm322, %v302
      %324 = vst.msk [vmem:[#allocation3 + $0x8] sm:$0xff] %vm322, %v303
      %325 = vst.msk [vmem:[#allocation3 + $0x10] sm:$0xff] %vm322, %v304
      %326 = vst.msk [vmem:[#allocation3 + $0x18] sm:$0xff] %vm322, %v305
      %327 = vst.msk [vmem:[#allocation3 + $0x20] sm:$0xff] %vm322, %v306
      %328 = vst.msk [vmem:[#allocation3 + $0x28] sm:$0xff] %vm322, %v307
      %329 = vst.msk [vmem:[#allocation3 + $0x30] sm:$0xff] %vm322, %v308
      %330 = vst.msk [vmem:[#allocation3 + $0x38] sm:$0xff] %vm322, %v309
      %331 = vst.msk [vmem:[#allocation3 + $0x40] sm:$0xff] %vm322, %v310
      %332 = vst.msk [vmem:[#allocation3 + $0x48] sm:$0xff] %vm322, %v311
      %333 = vst.msk [vmem:[#allocation3 + $0x50] sm:$0xff] %vm322, %v312
      %334 = vst.msk [vmem:[#allocation3 + $0x58] sm:$0xff] %vm322, %v313
      %335 = vst.msk [vmem:[#allocation3 + $0x60] sm:$0xff] %vm322, %v314
      %336 = vst.msk [vmem:[#allocation3 + $0x68] sm:$0xff] %vm322, %v315
      %337 = vst.msk [vmem:[#allocation3 + $0x70] sm:$0xff] %vm322, %v316
      %338 = vst.msk [vmem:[#allocation3 + $0x78] sm:$0xff] %vm322, %v317
      %339 = vst.msk [vmem:[#allocation3 + $0x80] sm:$0xff] %vm322, %v318
      %340 = vst.msk [vmem:[#allocation3 + $0x88] sm:$0xff] %vm322, %v319
      %341 = vst.msk [vmem:[#allocation3 + $0x90] sm:$0xff] %vm322, %v320
      %342 = vst.msk [vmem:[#allocation3 + $0x98] sm:$0xff] %vm322, %v321
      %v343 = vld [vmem:[#allocation3] sm:$0xff]
      %v344 = vld [vmem:[#allocation3 + $0x8] sm:$0xff]
      %v345 = vld [vmem:[#allocation3 + $0x10] sm:$0xff]
      %v346 = vld [vmem:[#allocation3 + $0x18] sm:$0xff]
      %v347 = vld [vmem:[#allocation3 + $0x20] sm:$0xff]
      %v348 = vld [vmem:[#allocation3 + $0x28] sm:$0xff]
      %v349 = vld [vmem:[#allocation3 + $0x30] sm:$0xff]
      %v350 = vld [vmem:[#allocation3 + $0x38] sm:$0xff]
      %v351 = vld [vmem:[#allocation3 + $0x40] sm:$0xff]
      %v352 = vld [vmem:[#allocation3 + $0x48] sm:$0xff]
      %v353 = vld [vmem:[#allocation3 + $0x50] sm:$0xff]
      %v354 = vld [vmem:[#allocation3 + $0x58] sm:$0xff]
      %v355 = vld [vmem:[#allocation3 + $0x60] sm:$0xff]
      %v356 = vld [vmem:[#allocation3 + $0x68] sm:$0xff]
      %v357 = vld [vmem:[#allocation3 + $0x70] sm:$0xff]
      %v358 = vld [vmem:[#allocation3 + $0x78] sm:$0xff]
      %v359 = vld [vmem:[#allocation3 + $0x80] sm:$0xff]
      %v360 = vld [vmem:[#allocation3 + $0x88] sm:$0xff]
      %v361 = vld [vmem:[#allocation3 + $0x90] sm:$0xff]
      %v362 = vld [vmem:[#allocation3 + $0x98] sm:$0xff]
      %s363 = scalar_lea.vmem [#allocation2], 32
      %v364 = vld [vmem:[%s363] sm:$0xff]
      %v365 = vld [vmem:[%s363 + $0x8] sm:$0xff]
      %v366 = vld [vmem:[%s363 + $0x10] sm:$0xff]
      %v367 = vld [vmem:[%s363 + $0x18] sm:$0xff]
      %v368 = vld [vmem:[%s363 + $0x40] sm:$0xff]
      %v369 = vld [vmem:[%s363 + $0x48] sm:$0xff]
      %v370 = vld [vmem:[%s363 + $0x50] sm:$0xff]
      %v371 = vld [vmem:[%s363 + $0x58] sm:$0xff]
      %v372 = vld [vmem:[%s363 + $0x80] sm:$0xff]
      %v373 = vld [vmem:[%s363 + $0x88] sm:$0xff]
      %v374 = vld [vmem:[%s363 + $0x90] sm:$0xff]
      %v375 = vld [vmem:[%s363 + $0x98] sm:$0xff]
      %v376 = vld [vmem:[%s363 + $0xc0] sm:$0xff]
      %v377 = vld [vmem:[%s363 + $0xc8] sm:$0xff]
      %v378 = vld [vmem:[%s363 + $0xd0] sm:$0xff]
      %v379 = vld [vmem:[%s363 + $0xd8] sm:$0xff]
      %v380 = vld [vmem:[%s363 + $0x100] sm:$0xff]
      %v381 = vld [vmem:[%s363 + $0x108] sm:$0xff]
      %v382 = vld [vmem:[%s363 + $0x110] sm:$0xff]
      %v383 = vld [vmem:[%s363 + $0x118] sm:$0xff]
      %v384 = vadd.f32 %v343, %v364
      %v385 = vadd.f32 %v344, %v365
      %v386 = vadd.f32 %v345, %v366
      %v387 = vadd.f32 %v346, %v367
      %v388 = vadd.f32 %v347, %v368
      %v389 = vadd.f32 %v348, %v369
      %v390 = vadd.f32 %v349, %v370
      %v391 = vadd.f32 %v350, %v371
      %v392 = vadd.f32 %v351, %v372
      %v393 = vadd.f32 %v352, %v373
      %v394 = vadd.f32 %v353, %v374
      %v395 = vadd.f32 %v354, %v375
      %v396 = vadd.f32 %v355, %v376
      %v397 = vadd.f32 %v356, %v377
      %v398 = vadd.f32 %v357, %v378
      %v399 = vadd.f32 %v358, %v379
      %v400 = vadd.f32 %v359, %v380
      %v401 = vadd.f32 %v360, %v381
      %v402 = vadd.f32 %v361, %v382
      %v403 = vadd.f32 %v362, %v383
      %404 = vst.msk [vmem:[#allocation3] sm:$0xff] %vm322, %v384
      %405 = vst.msk [vmem:[#allocation3 + $0x8] sm:$0xff] %vm322, %v385
      %406 = vst.msk [vmem:[#allocation3 + $0x10] sm:$0xff] %vm322, %v386
      %407 = vst.msk [vmem:[#allocation3 + $0x18] sm:$0xff] %vm322, %v387
      %408 = vst.msk [vmem:[#allocation3 + $0x20] sm:$0xff] %vm322, %v388
      %409 = vst.msk [vmem:[#allocation3 + $0x28] sm:$0xff] %vm322, %v389
      %410 = vst.msk [vmem:[#allocation3 + $0x30] sm:$0xff] %vm322, %v390
      %411 = vst.msk [vmem:[#allocation3 + $0x38] sm:$0xff] %vm322, %v391
      %412 = vst.msk [vmem:[#allocation3 + $0x40] sm:$0xff] %vm322, %v392
      %413 = vst.msk [vmem:[#allocation3 + $0x48] sm:$0xff] %vm322, %v393
      %414 = vst.msk [vmem:[#allocation3 + $0x50] sm:$0xff] %vm322, %v394
      %415 = vst.msk [vmem:[#allocation3 + $0x58] sm:$0xff] %vm322, %v395
      %416 = vst.msk [vmem:[#allocation3 + $0x60] sm:$0xff] %vm322, %v396
      %417 = vst.msk [vmem:[#allocation3 + $0x68] sm:$0xff] %vm322, %v397
      %418 = vst.msk [vmem:[#allocation3 + $0x70] sm:$0xff] %vm322, %v398
      %419 = vst.msk [vmem:[#allocation3 + $0x78] sm:$0xff] %vm322, %v399
      %420 = vst.msk [vmem:[#allocation3 + $0x80] sm:$0xff] %vm322, %v400
      %421 = vst.msk [vmem:[#allocation3 + $0x88] sm:$0xff] %vm322, %v401
      %422 = vst.msk [vmem:[#allocation3 + $0x90] sm:$0xff] %vm322, %v402
      %423 = vst.msk [vmem:[#allocation3 + $0x98] sm:$0xff] %vm322, %v403
      %v424 = vld [vmem:[#allocation3] sm:$0xff]
      %v425 = vld [vmem:[#allocation3 + $0x8] sm:$0xff]
      %v426 = vld [vmem:[#allocation3 + $0x10] sm:$0xff]
      %v427 = vld [vmem:[#allocation3 + $0x18] sm:$0xff]
      %v428 = vld [vmem:[#allocation3 + $0x20] sm:$0xff]
      %v429 = vld [vmem:[#allocation3 + $0x28] sm:$0xff]
      %v430 = vld [vmem:[#allocation3 + $0x30] sm:$0xff]
      %v431 = vld [vmem:[#allocation3 + $0x38] sm:$0xff]
      %v432 = vld [vmem:[#allocation3 + $0x40] sm:$0xff]
      %v433 = vld [vmem:[#allocation3 + $0x48] sm:$0xff]
      %v434 = vld [vmem:[#allocation3 + $0x50] sm:$0xff]
      %v435 = vld [vmem:[#allocation3 + $0x58] sm:$0xff]
      %v436 = vld [vmem:[#allocation3 + $0x60] sm:$0xff]
      %v437 = vld [vmem:[#allocation3 + $0x68] sm:$0xff]
      %v438 = vld [vmem:[#allocation3 + $0x70] sm:$0xff]
      %v439 = vld [vmem:[#allocation3 + $0x78] sm:$0xff]
      %v440 = vld [vmem:[#allocation3 + $0x80] sm:$0xff]
      %v441 = vld [vmem:[#allocation3 + $0x88] sm:$0xff]
      %v442 = vld [vmem:[#allocation3 + $0x90] sm:$0xff]
      %v443 = vld [vmem:[#allocation3 + $0x98] sm:$0xff]
      %s444 = scalar_lea.vmem [#allocation2], 64
      %v445 = vld [vmem:[%s444] sm:$0xff]
      %v446 = vld [vmem:[%s444 + $0x8] sm:$0xff]
      %v447 = vld [vmem:[%s444 + $0x10] sm:$0xff]
      %v448 = vld [vmem:[%s444 + $0x18] sm:$0xff]
      %v449 = vld [vmem:[%s444 + $0x40] sm:$0xff]
      %v450 = vld [vmem:[%s444 + $0x48] sm:$0xff]
      %v451 = vld [vmem:[%s444 + $0x50] sm:$0xff]
      %v452 = vld [vmem:[%s444 + $0x58] sm:$0xff]
      %v453 = vld [vmem:[%s444 + $0x80] sm:$0xff]
      %v454 = vld [vmem:[%s444 + $0x88] sm:$0xff]
      %v455 = vld [vmem:[%s444 + $0x90] sm:$0xff]
      %v456 = vld [vmem:[%s444 + $0x98] sm:$0xff]
      %v457 = vld [vmem:[%s444 + $0xc0] sm:$0xff]
      %v458 = vld [vmem:[%s444 + $0xc8] sm:$0xff]
      %v459 = vld [vmem:[%s444 + $0xd0] sm:$0xff]
      %v460 = vld [vmem:[%s444 + $0xd8] sm:$0xff]
      %v461 = vld [vmem:[%s444 + $0x100] sm:$0xff]
      %v462 = vld [vmem:[%s444 + $0x108] sm:$0xff]
      %v463 = vld [vmem:[%s444 + $0x110] sm:$0xff]
      %v464 = vld [vmem:[%s444 + $0x118] sm:$0xff]
      %v465 = vadd.f32 %v424, %v445
      %v466 = vadd.f32 %v425, %v446
      %v467 = vadd.f32 %v426, %v447
      %v468 = vadd.f32 %v427, %v448
      %v469 = vadd.f32 %v428, %v449
      %v470 = vadd.f32 %v429, %v450
      %v471 = vadd.f32 %v430, %v451
      %v472 = vadd.f32 %v431, %v452
      %v473 = vadd.f32 %v432, %v453
      %v474 = vadd.f32 %v433, %v454
      %v475 = vadd.f32 %v434, %v455
      %v476 = vadd.f32 %v435, %v456
      %v477 = vadd.f32 %v436, %v457
      %v478 = vadd.f32 %v437, %v458
      %v479 = vadd.f32 %v438, %v459
      %v480 = vadd.f32 %v439, %v460
      %v481 = vadd.f32 %v440, %v461
      %v482 = vadd.f32 %v441, %v462
      %v483 = vadd.f32 %v442, %v463
      %v484 = vadd.f32 %v443, %v464
      %485 = vst.msk [vmem:[#allocation3] sm:$0xff] %vm322, %v465
      %486 = vst.msk [vmem:[#allocation3 + $0x8] sm:$0xff] %vm322, %v466
      %487 = vst.msk [vmem:[#allocation3 + $0x10] sm:$0xff] %vm322, %v467
      %488 = vst.msk [vmem:[#allocation3 + $0x18] sm:$0xff] %vm322, %v468
      %489 = vst.msk [vmem:[#allocation3 + $0x20] sm:$0xff] %vm322, %v469
      %490 = vst.msk [vmem:[#allocation3 + $0x28] sm:$0xff] %vm322, %v470
      %491 = vst.msk [vmem:[#allocation3 + $0x30] sm:$0xff] %vm322, %v471
      %492 = vst.msk [vmem:[#allocation3 + $0x38] sm:$0xff] %vm322, %v472
      %493 = vst.msk [vmem:[#allocation3 + $0x40] sm:$0xff] %vm322, %v473
      %494 = vst.msk [vmem:[#allocation3 + $0x48] sm:$0xff] %vm322, %v474
      %495 = vst.msk [vmem:[#allocation3 + $0x50] sm:$0xff] %vm322, %v475
      %496 = vst.msk [vmem:[#allocation3 + $0x58] sm:$0xff] %vm322, %v476
      %497 = vst.msk [vmem:[#allocation3 + $0x60] sm:$0xff] %vm322, %v477
      %498 = vst.msk [vmem:[#allocation3 + $0x68] sm:$0xff] %vm322, %v478
      %499 = vst.msk [vmem:[#allocation3 + $0x70] sm:$0xff] %vm322, %v479
      %500 = vst.msk [vmem:[#allocation3 + $0x78] sm:$0xff] %vm322, %v480
      %501 = vst.msk [vmem:[#allocation3 + $0x80] sm:$0xff] %vm322, %v481
      %502 = vst.msk [vmem:[#allocation3 + $0x88] sm:$0xff] %vm322, %v482
      %503 = vst.msk [vmem:[#allocation3 + $0x90] sm:$0xff] %vm322, %v483
      %504 = vst.msk [vmem:[#allocation3 + $0x98] sm:$0xff] %vm322, %v484
      %v505 = vld [vmem:[#allocation3] sm:$0xff]
      %v506 = vld [vmem:[#allocation3 + $0x8] sm:$0xff]
      %v507 = vld [vmem:[#allocation3 + $0x10] sm:$0xff]
      %v508 = vld [vmem:[#allocation3 + $0x18] sm:$0xff]
      %v509 = vld [vmem:[#allocation3 + $0x20] sm:$0xff]
      %v510 = vld [vmem:[#allocation3 + $0x28] sm:$0xff]
      %v511 = vld [vmem:[#allocation3 + $0x30] sm:$0xff]
      %v512 = vld [vmem:[#allocation3 + $0x38] sm:$0xff]
      %v513 = vld [vmem:[#allocation3 + $0x40] sm:$0xff]
      %v514 = vld [vmem:[#allocation3 + $0x48] sm:$0xff]
      %v515 = vld [vmem:[#allocation3 + $0x50] sm:$0xff]
      %v516 = vld [vmem:[#allocation3 + $0x58] sm:$0xff]
      %v517 = vld [vmem:[#allocation3 + $0x60] sm:$0xff]
      %v518 = vld [vmem:[#allocation3 + $0x68] sm:$0xff]
      %v519 = vld [vmem:[#allocation3 + $0x70] sm:$0xff]
      %v520 = vld [vmem:[#allocation3 + $0x78] sm:$0xff]
      %v521 = vld [vmem:[#allocation3 + $0x80] sm:$0xff]
      %v522 = vld [vmem:[#allocation3 + $0x88] sm:$0xff]
      %v523 = vld [vmem:[#allocation3 + $0x90] sm:$0xff]
      %v524 = vld [vmem:[#allocation3 + $0x98] sm:$0xff]
      %s525 = scalar_lea.vmem [#allocation2], 96
      %v526 = vld [vmem:[%s525] sm:$0xff]
      %v527 = vld [vmem:[%s525 + $0x8] sm:$0xff]
      %v528 = vld [vmem:[%s525 + $0x10] sm:$0xff]
      %v529 = vld [vmem:[%s525 + $0x18] sm:$0xff]
      %v530 = vld [vmem:[%s525 + $0x40] sm:$0xff]
      %v531 = vld [vmem:[%s525 + $0x48] sm:$0xff]
      %v532 = vld [vmem:[%s525 + $0x50] sm:$0xff]
      %v533 = vld [vmem:[%s525 + $0x58] sm:$0xff]
      %v534 = vld [vmem:[%s525 + $0x80] sm:$0xff]
      %v535 = vld [vmem:[%s525 + $0x88] sm:$0xff]
      %v536 = vld [vmem:[%s525 + $0x90] sm:$0xff]
      %v537 = vld [vmem:[%s525 + $0x98] sm:$0xff]
      %v538 = vld [vmem:[%s525 + $0xc0] sm:$0xff]
      %v539 = vld [vmem:[%s525 + $0xc8] sm:$0xff]
      %v540 = vld [vmem:[%s525 + $0xd0] sm:$0xff]
      %v541 = vld [vmem:[%s525 + $0xd8] sm:$0xff]
      %v542 = vld [vmem:[%s525 + $0x100] sm:$0xff]
      %v543 = vld [vmem:[%s525 + $0x108] sm:$0xff]
      %v544 = vld [vmem:[%s525 + $0x110] sm:$0xff]
      %v545 = vld [vmem:[%s525 + $0x118] sm:$0xff]
      %v546 = vadd.f32 %v505, %v526
      %v547 = vadd.f32 %v506, %v527
      %v548 = vadd.f32 %v507, %v528
      %v549 = vadd.f32 %v508, %v529
      %v550 = vadd.f32 %v509, %v530
      %v551 = vadd.f32 %v510, %v531
      %v552 = vadd.f32 %v511, %v532
      %v553 = vadd.f32 %v512, %v533
      %v554 = vadd.f32 %v513, %v534
      %v555 = vadd.f32 %v514, %v535
      %v556 = vadd.f32 %v515, %v536
      %v557 = vadd.f32 %v516, %v537
      %v558 = vadd.f32 %v517, %v538
      %v559 = vadd.f32 %v518, %v539
      %v560 = vadd.f32 %v519, %v540
      %v561 = vadd.f32 %v520, %v541
      %v562 = vadd.f32 %v521, %v542
      %v563 = vadd.f32 %v522, %v543
      %v564 = vadd.f32 %v523, %v544
      %v565 = vadd.f32 %v524, %v545
      %566 = vst.msk [vmem:[#allocation3] sm:$0xff] %vm322, %v546
      %567 = vst.msk [vmem:[#allocation3 + $0x8] sm:$0xff] %vm322, %v547
      %568 = vst.msk [vmem:[#allocation3 + $0x10] sm:$0xff] %vm322, %v548
      %569 = vst.msk [vmem:[#allocation3 + $0x18] sm:$0xff] %vm322, %v549
      %570 = vst.msk [vmem:[#allocation3 + $0x20] sm:$0xff] %vm322, %v550
      %571 = vst.msk [vmem:[#allocation3 + $0x28] sm:$0xff] %vm322, %v551
      %572 = vst.msk [vmem:[#allocation3 + $0x30] sm:$0xff] %vm322, %v552
      %573 = vst.msk [vmem:[#allocation3 + $0x38] sm:$0xff] %vm322, %v553
      %574 = vst.msk [vmem:[#allocation3 + $0x40] sm:$0xff] %vm322, %v554
      %575 = vst.msk [vmem:[#allocation3 + $0x48] sm:$0xff] %vm322, %v555
      %576 = vst.msk [vmem:[#allocation3 + $0x50] sm:$0xff] %vm322, %v556
      %577 = vst.msk [vmem:[#allocation3 + $0x58] sm:$0xff] %vm322, %v557
      %578 = vst.msk [vmem:[#allocation3 + $0x60] sm:$0xff] %vm322, %v558
      %579 = vst.msk [vmem:[#allocation3 + $0x68] sm:$0xff] %vm322, %v559
      %580 = vst.msk [vmem:[#allocation3 + $0x70] sm:$0xff] %vm322, %v560
      %581 = vst.msk [vmem:[#allocation3 + $0x78] sm:$0xff] %vm322, %v561
      %582 = vst.msk [vmem:[#allocation3 + $0x80] sm:$0xff] %vm322, %v562
      %583 = vst.msk [vmem:[#allocation3 + $0x88] sm:$0xff] %vm322, %v563
      %584 = vst.msk [vmem:[#allocation3 + $0x90] sm:$0xff] %vm322, %v564
      %585 = vst.msk [vmem:[#allocation3 + $0x98] sm:$0xff] %vm322, %v565
      %v586 = vld [vmem:[#allocation3] sm:$0xff]
      %v587 = vld [vmem:[#allocation3 + $0x8] sm:$0xff]
      %v588 = vld [vmem:[#allocation3 + $0x10] sm:$0xff]
      %v589 = vld [vmem:[#allocation3 + $0x18] sm:$0xff]
      %v590 = vld [vmem:[#allocation3 + $0x20] sm:$0xff]
      %v591 = vld [vmem:[#allocation3 + $0x28] sm:$0xff]
      %v592 = vld [vmem:[#allocation3 + $0x30] sm:$0xff]
      %v593 = vld [vmem:[#allocation3 + $0x38] sm:$0xff]
      %v594 = vld [vmem:[#allocation3 + $0x40] sm:$0xff]
      %v595 = vld [vmem:[#allocation3 + $0x48] sm:$0xff]
      %v596 = vld [vmem:[#allocation3 + $0x50] sm:$0xff]
      %v597 = vld [vmem:[#allocation3 + $0x58] sm:$0xff]
      %v598 = vld [vmem:[#allocation3 + $0x60] sm:$0xff]
      %v599 = vld [vmem:[#allocation3 + $0x68] sm:$0xff]
      %v600 = vld [vmem:[#allocation3 + $0x70] sm:$0xff]
      %v601 = vld [vmem:[#allocation3 + $0x78] sm:$0xff]
      %v602 = vld [vmem:[#allocation3 + $0x80] sm:$0xff]
      %v603 = vld [vmem:[#allocation3 + $0x88] sm:$0xff]
      %v604 = vld [vmem:[#allocation3 + $0x90] sm:$0xff]
      %v605 = vld [vmem:[#allocation3 + $0x98] sm:$0xff]
      %s606 = scalar_lea.vmem [#allocation2], 128
      %v607 = vld [vmem:[%s606] sm:$0xff]
      %v608 = vld [vmem:[%s606 + $0x8] sm:$0xff]
      %v609 = vld [vmem:[%s606 + $0x10] sm:$0xff]
      %v610 = vld [vmem:[%s606 + $0x18] sm:$0xff]
      %v611 = vld [vmem:[%s606 + $0x40] sm:$0xff]
      %v612 = vld [vmem:[%s606 + $0x48] sm:$0xff]
      %v613 = vld [vmem:[%s606 + $0x50] sm:$0xff]
      %v614 = vld [vmem:[%s606 + $0x58] sm:$0xff]
      %v615 = vld [vmem:[%s606 + $0x80] sm:$0xff]
      %v616 = vld [vmem:[%s606 + $0x88] sm:$0xff]
      %v617 = vld [vmem:[%s606 + $0x90] sm:$0xff]
      %v618 = vld [vmem:[%s606 + $0x98] sm:$0xff]
      %v619 = vld [vmem:[%s606 + $0xc0] sm:$0xff]
      %v620 = vld [vmem:[%s606 + $0xc8] sm:$0xff]
      %v621 = vld [vmem:[%s606 + $0xd0] sm:$0xff]
      %v622 = vld [vmem:[%s606 + $0xd8] sm:$0xff]
      %v623 = vld [vmem:[%s606 + $0x100] sm:$0xff]
      %v624 = vld [vmem:[%s606 + $0x108] sm:$0xff]
      %v625 = vld [vmem:[%s606 + $0x110] sm:$0xff]
      %v626 = vld [vmem:[%s606 + $0x118] sm:$0xff]
      %v627 = vadd.f32 %v586, %v607
      %v628 = vadd.f32 %v587, %v608
      %v629 = vadd.f32 %v588, %v609
      %v630 = vadd.f32 %v589, %v610
      %v631 = vadd.f32 %v590, %v611
      %v632 = vadd.f32 %v591, %v612
      %v633 = vadd.f32 %v592, %v613
      %v634 = vadd.f32 %v593, %v614
      %v635 = vadd.f32 %v594, %v615
      %v636 = vadd.f32 %v595, %v616
      %v637 = vadd.f32 %v596, %v617
      %v638 = vadd.f32 %v597, %v618
      %v639 = vadd.f32 %v598, %v619
      %v640 = vadd.f32 %v599, %v620
      %v641 = vadd.f32 %v600, %v621
      %v642 = vadd.f32 %v601, %v622
      %v643 = vadd.f32 %v602, %v623
      %v644 = vadd.f32 %v603, %v624
      %v645 = vadd.f32 %v604, %v625
      %v646 = vadd.f32 %v605, %v626
      %647 = vst.msk [vmem:[#allocation3] sm:$0xff] %vm322, %v627
      %648 = vst.msk [vmem:[#allocation3 + $0x8] sm:$0xff] %vm322, %v628
      %649 = vst.msk [vmem:[#allocation3 + $0x10] sm:$0xff] %vm322, %v629
      %650 = vst.msk [vmem:[#allocation3 + $0x18] sm:$0xff] %vm322, %v630
      %651 = vst.msk [vmem:[#allocation3 + $0x20] sm:$0xff] %vm322, %v631
      %652 = vst.msk [vmem:[#allocation3 + $0x28] sm:$0xff] %vm322, %v632
      %653 = vst.msk [vmem:[#allocation3 + $0x30] sm:$0xff] %vm322, %v633
      %654 = vst.msk [vmem:[#allocation3 + $0x38] sm:$0xff] %vm322, %v634
      %655 = vst.msk [vmem:[#allocation3 + $0x40] sm:$0xff] %vm322, %v635
      %656 = vst.msk [vmem:[#allocation3 + $0x48] sm:$0xff] %vm322, %v636
      %657 = vst.msk [vmem:[#allocation3 + $0x50] sm:$0xff] %vm322, %v637
      %658 = vst.msk [vmem:[#allocation3 + $0x58] sm:$0xff] %vm322, %v638
      %659 = vst.msk [vmem:[#allocation3 + $0x60] sm:$0xff] %vm322, %v639
      %660 = vst.msk [vmem:[#allocation3 + $0x68] sm:$0xff] %vm322, %v640
      %661 = vst.msk [vmem:[#allocation3 + $0x70] sm:$0xff] %vm322, %v641
      %662 = vst.msk [vmem:[#allocation3 + $0x78] sm:$0xff] %vm322, %v642
      %663 = vst.msk [vmem:[#allocation3 + $0x80] sm:$0xff] %vm322, %v643
      %664 = vst.msk [vmem:[#allocation3 + $0x88] sm:$0xff] %vm322, %v644
      %665 = vst.msk [vmem:[#allocation3 + $0x90] sm:$0xff] %vm322, %v645
      %666 = vst.msk [vmem:[#allocation3 + $0x98] sm:$0xff] %vm322, %v646
      %v667 = vld [vmem:[#allocation3] sm:$0xff]
      %v668 = vld [vmem:[#allocation3 + $0x8] sm:$0xff]
      %v669 = vld [vmem:[#allocation3 + $0x10] sm:$0xff]
      %v670 = vld [vmem:[#allocation3 + $0x18] sm:$0xff]
      %v671 = vld [vmem:[#allocation3 + $0x20] sm:$0xff]
      %v672 = vld [vmem:[#allocation3 + $0x28] sm:$0xff]
      %v673 = vld [vmem:[#allocation3 + $0x30] sm:$0xff]
      %v674 = vld [vmem:[#allocation3 + $0x38] sm:$0xff]
      %v675 = vld [vmem:[#allocation3 + $0x40] sm:$0xff]
      %v676 = vld [vmem:[#allocation3 + $0x48] sm:$0xff]
      %v677 = vld [vmem:[#allocation3 + $0x50] sm:$0xff]
      %v678 = vld [vmem:[#allocation3 + $0x58] sm:$0xff]
      %v679 = vld [vmem:[#allocation3 + $0x60] sm:$0xff]
      %v680 = vld [vmem:[#allocation3 + $0x68] sm:$0xff]
      %v681 = vld [vmem:[#allocation3 + $0x70] sm:$0xff]
      %v682 = vld [vmem:[#allocation3 + $0x78] sm:$0xff]
      %v683 = vld [vmem:[#allocation3 + $0x80] sm:$0xff]
      %v684 = vld [vmem:[#allocation3 + $0x88] sm:$0xff]
      %v685 = vld [vmem:[#allocation3 + $0x90] sm:$0xff]
      %v686 = vld [vmem:[#allocation3 + $0x98] sm:$0xff]
      %s687 = scalar_lea.vmem [#allocation2], 160
      %v688 = vld [vmem:[%s687] sm:$0xff]
      %v689 = vld [vmem:[%s687 + $0x8] sm:$0xff]
      %v690 = vld [vmem:[%s687 + $0x10] sm:$0xff]
      %v691 = vld [vmem:[%s687 + $0x18] sm:$0xff]
      %v692 = vld [vmem:[%s687 + $0x40] sm:$0xff]
      %v693 = vld [vmem:[%s687 + $0x48] sm:$0xff]
      %v694 = vld [vmem:[%s687 + $0x50] sm:$0xff]
      %v695 = vld [vmem:[%s687 + $0x58] sm:$0xff]
      %v696 = vld [vmem:[%s687 + $0x80] sm:$0xff]
      %v697 = vld [vmem:[%s687 + $0x88] sm:$0xff]
      %v698 = vld [vmem:[%s687 + $0x90] sm:$0xff]
      %v699 = vld [vmem:[%s687 + $0x98] sm:$0xff]
      %v700 = vld [vmem:[%s687 + $0xc0] sm:$0xff]
      %v701 = vld [vmem:[%s687 + $0xc8] sm:$0xff]
      %v702 = vld [vmem:[%s687 + $0xd0] sm:$0xff]
      %v703 = vld [vmem:[%s687 + $0xd8] sm:$0xff]
      %v704 = vld [vmem:[%s687 + $0x100] sm:$0xff]
      %v705 = vld [vmem:[%s687 + $0x108] sm:$0xff]
      %v706 = vld [vmem:[%s687 + $0x110] sm:$0xff]
      %v707 = vld [vmem:[%s687 + $0x118] sm:$0xff]
      %v708 = vadd.f32 %v667, %v688
      %v709 = vadd.f32 %v668, %v689
      %v710 = vadd.f32 %v669, %v690
      %v711 = vadd.f32 %v670, %v691
      %v712 = vadd.f32 %v671, %v692
      %v713 = vadd.f32 %v672, %v693
      %v714 = vadd.f32 %v673, %v694
      %v715 = vadd.f32 %v674, %v695
      %v716 = vadd.f32 %v675, %v696
      %v717 = vadd.f32 %v676, %v697
      %v718 = vadd.f32 %v677, %v698
      %v719 = vadd.f32 %v678, %v699
      %v720 = vadd.f32 %v679, %v700
      %v721 = vadd.f32 %v680, %v701
      %v722 = vadd.f32 %v681, %v702
      %v723 = vadd.f32 %v682, %v703
      %v724 = vadd.f32 %v683, %v704
      %v725 = vadd.f32 %v684, %v705
      %v726 = vadd.f32 %v685, %v706
      %v727 = vadd.f32 %v686, %v707
      %728 = vst.msk [vmem:[#allocation3] sm:$0xff] %vm322, %v708
      %729 = vst.msk [vmem:[#allocation3 + $0x8] sm:$0xff] %vm322, %v709
      %730 = vst.msk [vmem:[#allocation3 + $0x10] sm:$0xff] %vm322, %v710
      %731 = vst.msk [vmem:[#allocation3 + $0x18] sm:$0xff] %vm322, %v711
      %732 = vst.msk [vmem:[#allocation3 + $0x20] sm:$0xff] %vm322, %v712
      %733 = vst.msk [vmem:[#allocation3 + $0x28] sm:$0xff] %vm322, %v713
      %734 = vst.msk [vmem:[#allocation3 + $0x30] sm:$0xff] %vm322, %v714
      %735 = vst.msk [vmem:[#allocation3 + $0x38] sm:$0xff] %vm322, %v715
      %736 = vst.msk [vmem:[#allocation3 + $0x40] sm:$0xff] %vm322, %v716
      %737 = vst.msk [vmem:[#allocation3 + $0x48] sm:$0xff] %vm322, %v717
      %738 = vst.msk [vmem:[#allocation3 + $0x50] sm:$0xff] %vm322, %v718
      %739 = vst.msk [vmem:[#allocation3 + $0x58] sm:$0xff] %vm322, %v719
      %740 = vst.msk [vmem:[#allocation3 + $0x60] sm:$0xff] %vm322, %v720
      %741 = vst.msk [vmem:[#allocation3 + $0x68] sm:$0xff] %vm322, %v721
      %742 = vst.msk [vmem:[#allocation3 + $0x70] sm:$0xff] %vm322, %v722
      %743 = vst.msk [vmem:[#allocation3 + $0x78] sm:$0xff] %vm322, %v723
      %744 = vst.msk [vmem:[#allocation3 + $0x80] sm:$0xff] %vm322, %v724
      %745 = vst.msk [vmem:[#allocation3 + $0x88] sm:$0xff] %vm322, %v725
      %746 = vst.msk [vmem:[#allocation3 + $0x90] sm:$0xff] %vm322, %v726
      %747 = vst.msk [vmem:[#allocation3 + $0x98] sm:$0xff] %vm322, %v727
      %s748 = scalar_lea.vmem [#allocation3], 4
      %v749 = vld [vmem:[%s748] ss:$2 sm:$0xff]
      %s750 = scalar_lea.vmem [#allocation3], 20
      %v751 = vld [vmem:[%s750] ss:$2 sm:$0x1]
      %s752 = scalar_lea.vmem [#allocation3], 36
      %v753 = vld [vmem:[%s752] ss:$2 sm:$0xff]
      %s754 = scalar_lea.vmem [#allocation3], 52
      %v755 = vld [vmem:[%s754] ss:$2 sm:$0x1]
      %s756 = scalar_lea.vmem [#allocation3], 68
      %v757 = vld [vmem:[%s756] ss:$2 sm:$0xff]
      %s758 = scalar_lea.vmem [#allocation3], 84
      %v759 = vld [vmem:[%s758] ss:$2 sm:$0x1]
      %s760 = scalar_lea.vmem [#allocation3], 100
      %v761 = vld [vmem:[%s760] ss:$2 sm:$0xff]
      %s762 = scalar_lea.vmem [#allocation3], 116
      %v763 = vld [vmem:[%s762] ss:$2 sm:$0x1]
      %s764 = scalar_lea.vmem [#allocation3], 132
      %v765 = vld [vmem:[%s764] ss:$2 sm:$0xff]
      %s766 = scalar_lea.vmem [#allocation3], 148
      %v767 = vld [vmem:[%s766] ss:$2 sm:$0x1]
      %s768 = scalar_lea.vmem [#allocation3], 5
      %v769 = vld [vmem:[%s768] ss:$2 sm:$0xff]
      %s770 = scalar_lea.vmem [#allocation3], 21
      %v771 = vld [vmem:[%s770] ss:$2 sm:$0x1]
      %s772 = scalar_lea.vmem [#allocation3], 37
      %v773 = vld [vmem:[%s772] ss:$2 sm:$0xff]
      %s774 = scalar_lea.vmem [#allocation3], 53
      %v775 = vld [vmem:[%s774] ss:$2 sm:$0x1]
      %s776 = scalar_lea.vmem [#allocation3], 69
      %v777 = vld [vmem:[%s776] ss:$2 sm:$0xff]
      %s778 = scalar_lea.vmem [#allocation3], 85
      %v779 = vld [vmem:[%s778] ss:$2 sm:$0x1]
      %s780 = scalar_lea.vmem [#allocation3], 101
      %v781 = vld [vmem:[%s780] ss:$2 sm:$0xff]
      %s782 = scalar_lea.vmem [#allocation3], 117
      %v783 = vld [vmem:[%s782] ss:$2 sm:$0x1]
      %s784 = scalar_lea.vmem [#allocation3], 133
      %v785 = vld [vmem:[%s784] ss:$2 sm:$0xff]
      %s786 = scalar_lea.vmem [#allocation3], 149
      %v787 = vld [vmem:[%s786] ss:$2 sm:$0x1]
      %v788 = vadd.f32 %v749, %v769
      %v789 = vadd.f32 %v751, %v771
      %v790 = vadd.f32 %v753, %v773
      %v791 = vadd.f32 %v755, %v775
      %v792 = vadd.f32 %v757, %v777
      %v793 = vadd.f32 %v759, %v779
      %v794 = vadd.f32 %v761, %v781
      %v795 = vadd.f32 %v763, %v783
      %v796 = vadd.f32 %v765, %v785
      %v797 = vadd.f32 %v767, %v787
      %s798 = scalar_lea.vmem [#allocation3], 6
      %v799 = vld [vmem:[%s798] ss:$2 sm:$0xff]
      %s800 = scalar_lea.vmem [#allocation3], 22
      %v801 = vld [vmem:[%s800] ss:$2 sm:$0x1]
      %s802 = scalar_lea.vmem [#allocation3], 38
      %v803 = vld [vmem:[%s802] ss:$2 sm:$0xff]
      %s804 = scalar_lea.vmem [#allocation3], 54
      %v805 = vld [vmem:[%s804] ss:$2 sm:$0x1]
      %s806 = scalar_lea.vmem [#allocation3], 70
      %v807 = vld [vmem:[%s806] ss:$2 sm:$0xff]
      %s808 = scalar_lea.vmem [#allocation3], 86
      %v809 = vld [vmem:[%s808] ss:$2 sm:$0x1]
      %s810 = scalar_lea.vmem [#allocation3], 102
      %v811 = vld [vmem:[%s810] ss:$2 sm:$0xff]
      %s812 = scalar_lea.vmem [#allocation3], 118
      %v813 = vld [vmem:[%s812] ss:$2 sm:$0x1]
      %s814 = scalar_lea.vmem [#allocation3], 134
      %v815 = vld [vmem:[%s814] ss:$2 sm:$0xff]
      %s816 = scalar_lea.vmem [#allocation3], 150
      %v817 = vld [vmem:[%s816] ss:$2 sm:$0x1]
      %v818 = vadd.f32 %v788, %v799
      %v819 = vadd.f32 %v789, %v801
      %v820 = vadd.f32 %v790, %v803
      %v821 = vadd.f32 %v791, %v805
      %v822 = vadd.f32 %v792, %v807
      %v823 = vadd.f32 %v793, %v809
      %v824 = vadd.f32 %v794, %v811
      %v825 = vadd.f32 %v795, %v813
      %v826 = vadd.f32 %v796, %v815
      %v827 = vadd.f32 %v797, %v817
      %s828 = scalar_lea.vmem [#allocation3], 7
      %v829 = vld [vmem:[%s828] ss:$2 sm:$0xff]
      %s830 = scalar_lea.vmem [#allocation3], 23
      %v831 = vld [vmem:[%s830] ss:$2 sm:$0x1]
      %s832 = scalar_lea.vmem [#allocation3], 39
      %v833 = vld [vmem:[%s832] ss:$2 sm:$0xff]
      %s834 = scalar_lea.vmem [#allocation3], 55
      %v835 = vld [vmem:[%s834] ss:$2 sm:$0x1]
      %s836 = scalar_lea.vmem [#allocation3], 71
      %v837 = vld [vmem:[%s836] ss:$2 sm:$0xff]
      %s838 = scalar_lea.vmem [#allocation3], 87
      %v839 = vld [vmem:[%s838] ss:$2 sm:$0x1]
      %s840 = scalar_lea.vmem [#allocation3], 103
      %v841 = vld [vmem:[%s840] ss:$2 sm:$0xff]
      %s842 = scalar_lea.vmem [#allocation3], 119
      %v843 = vld [vmem:[%s842] ss:$2 sm:$0x1]
      %s844 = scalar_lea.vmem [#allocation3], 135
      %v845 = vld [vmem:[%s844] ss:$2 sm:$0xff]
      %s846 = scalar_lea.vmem [#allocation3], 151
      %v847 = vld [vmem:[%s846] ss:$2 sm:$0x1]
      %v848 = vadd.f32 %v818, %v829
      %v849 = vadd.f32 %v819, %v831
      %v850 = vadd.f32 %v820, %v833
      %v851 = vadd.f32 %v821, %v835
      %v852 = vadd.f32 %v822, %v837
      %v853 = vadd.f32 %v823, %v839
      %v854 = vadd.f32 %v824, %v841
      %v855 = vadd.f32 %v825, %v843
      %v856 = vadd.f32 %v826, %v845
      %v857 = vadd.f32 %v827, %v847
      %s858 = scalar_lea.vmem [#allocation3], 8
      %v859 = vld [vmem:[%s858] ss:$2 sm:$0xff]
      %s860 = scalar_lea.vmem [#allocation3], 24
      %v861 = vld [vmem:[%s860] ss:$2 sm:$0x1]
      %s862 = scalar_lea.vmem [#allocation3], 40
      %v863 = vld [vmem:[%s862] ss:$2 sm:$0xff]
      %s864 = scalar_lea.vmem [#allocation3], 56
      %v865 = vld [vmem:[%s864] ss:$2 sm:$0x1]
      %s866 = scalar_lea.vmem [#allocation3], 72
      %v867 = vld [vmem:[%s866] ss:$2 sm:$0xff]
      %s868 = scalar_lea.vmem [#allocation3], 88
      %v869 = vld [vmem:[%s868] ss:$2 sm:$0x1]
      %s870 = scalar_lea.vmem [#allocation3], 104
      %v871 = vld [vmem:[%s870] ss:$2 sm:$0xff]
      %s872 = scalar_lea.vmem [#allocation3], 120
      %v873 = vld [vmem:[%s872] ss:$2 sm:$0x1]
      %s874 = scalar_lea.vmem [#allocation3], 136
      %v875 = vld [vmem:[%s874] ss:$2 sm:$0xff]
      %s876 = scalar_lea.vmem [#allocation3], 152
      %v877 = vld [vmem:[%s876] ss:$2 sm:$0x1]
      %v878 = vadd.f32 %v848, %v859
      %v879 = vadd.f32 %v849, %v861
      %v880 = vadd.f32 %v850, %v863
      %v881 = vadd.f32 %v851, %v865
      %v882 = vadd.f32 %v852, %v867
      %v883 = vadd.f32 %v853, %v869
      %v884 = vadd.f32 %v854, %v871
      %v885 = vadd.f32 %v855, %v873
      %v886 = vadd.f32 %v856, %v875
      %v887 = vadd.f32 %v857, %v877
      %s888 = scalar_lea.vmem [#allocation3], 9
      %v889 = vld [vmem:[%s888] ss:$2 sm:$0xff]
      %s890 = scalar_lea.vmem [#allocation3], 25
      %v891 = vld [vmem:[%s890] ss:$2 sm:$0x1]
      %s892 = scalar_lea.vmem [#allocation3], 41
      %v893 = vld [vmem:[%s892] ss:$2 sm:$0xff]
      %s894 = scalar_lea.vmem [#allocation3], 57
      %v895 = vld [vmem:[%s894] ss:$2 sm:$0x1]
      %s896 = scalar_lea.vmem [#allocation3], 73
      %v897 = vld [vmem:[%s896] ss:$2 sm:$0xff]
      %s898 = scalar_lea.vmem [#allocation3], 89
      %v899 = vld [vmem:[%s898] ss:$2 sm:$0x1]
      %s900 = scalar_lea.vmem [#allocation3], 105
      %v901 = vld [vmem:[%s900] ss:$2 sm:$0xff]
      %s902 = scalar_lea.vmem [#allocation3], 121
      %v903 = vld [vmem:[%s902] ss:$2 sm:$0x1]
      %s904 = scalar_lea.vmem [#allocation3], 137
      %v905 = vld [vmem:[%s904] ss:$2 sm:$0xff]
      %s906 = scalar_lea.vmem [#allocation3], 153
      %v907 = vld [vmem:[%s906] ss:$2 sm:$0x1]
      %v908 = vadd.f32 %v878, %v889
      %v909 = vadd.f32 %v879, %v891
      %v910 = vadd.f32 %v880, %v893
      %v911 = vadd.f32 %v881, %v895
      %v912 = vadd.f32 %v882, %v897
      %v913 = vadd.f32 %v883, %v899
      %v914 = vadd.f32 %v884, %v901
      %v915 = vadd.f32 %v885, %v903
      %v916 = vadd.f32 %v886, %v905
      %v917 = vadd.f32 %v887, %v907
      %s918 = scalar_lea.vmem [#allocation3], 10
      %v919 = vld [vmem:[%s918] ss:$2 sm:$0xff]
      %s920 = scalar_lea.vmem [#allocation3], 26
      %v921 = vld [vmem:[%s920] ss:$2 sm:$0x1]
      %s922 = scalar_lea.vmem [#allocation3], 42
      %v923 = vld [vmem:[%s922] ss:$2 sm:$0xff]
      %s924 = scalar_lea.vmem [#allocation3], 58
      %v925 = vld [vmem:[%s924] ss:$2 sm:$0x1]
      %s926 = scalar_lea.vmem [#allocation3], 74
      %v927 = vld [vmem:[%s926] ss:$2 sm:$0xff]
      %s928 = scalar_lea.vmem [#allocation3], 90
      %v929 = vld [vmem:[%s928] ss:$2 sm:$0x1]
      %s930 = scalar_lea.vmem [#allocation3], 106
      %v931 = vld [vmem:[%s930] ss:$2 sm:$0xff]
      %s932 = scalar_lea.vmem [#allocation3], 122
      %v933 = vld [vmem:[%s932] ss:$2 sm:$0x1]
      %s934 = scalar_lea.vmem [#allocation3], 138
      %v935 = vld [vmem:[%s934] ss:$2 sm:$0xff]
      %s936 = scalar_lea.vmem [#allocation3], 154
      %v937 = vld [vmem:[%s936] ss:$2 sm:$0x1]
      %v938 = vadd.f32 %v908, %v919
      %v939 = vadd.f32 %v909, %v921
      %v940 = vadd.f32 %v910, %v923
      %v941 = vadd.f32 %v911, %v925
      %v942 = vadd.f32 %v912, %v927
      %v943 = vadd.f32 %v913, %v929
      %v944 = vadd.f32 %v914, %v931
      %v945 = vadd.f32 %v915, %v933
      %v946 = vadd.f32 %v916, %v935
      %v947 = vadd.f32 %v917, %v937
      %s948 = scalar_lea.vmem [#allocation3], 11
      %v949 = vld [vmem:[%s948] ss:$2 sm:$0xff]
      %s950 = scalar_lea.vmem [#allocation3], 27
      %v951 = vld [vmem:[%s950] ss:$2 sm:$0x1]
      %s952 = scalar_lea.vmem [#allocation3], 43
      %v953 = vld [vmem:[%s952] ss:$2 sm:$0xff]
      %s954 = scalar_lea.vmem [#allocation3], 59
      %v955 = vld [vmem:[%s954] ss:$2 sm:$0x1]
      %s956 = scalar_lea.vmem [#allocation3], 75
      %v957 = vld [vmem:[%s956] ss:$2 sm:$0xff]
      %s958 = scalar_lea.vmem [#allocation3], 91
      %v959 = vld [vmem:[%s958] ss:$2 sm:$0x1]
      %s960 = scalar_lea.vmem [#allocation3], 107
      %v961 = vld [vmem:[%s960] ss:$2 sm:$0xff]
      %s962 = scalar_lea.vmem [#allocation3], 123
      %v963 = vld [vmem:[%s962] ss:$2 sm:$0x1]
      %s964 = scalar_lea.vmem [#allocation3], 139
      %v965 = vld [vmem:[%s964] ss:$2 sm:$0xff]
      %s966 = scalar_lea.vmem [#allocation3], 155
      %v967 = vld [vmem:[%s966] ss:$2 sm:$0x1]
      %v968 = vadd.f32 %v938, %v949
      %v969 = vadd.f32 %v939, %v951
      %v970 = vadd.f32 %v940, %v953
      %v971 = vadd.f32 %v941, %v955
      %v972 = vadd.f32 %v942, %v957
      %v973 = vadd.f32 %v943, %v959
      %v974 = vadd.f32 %v944, %v961
      %v975 = vadd.f32 %v945, %v963
      %v976 = vadd.f32 %v946, %v965
      %v977 = vadd.f32 %v947, %v967
      %v978 = vmul.f32 %v968, 0.020833334
      %v979 = vmul.f32 %v969, 0.020833334
      %v980 = vmul.f32 %v970, 0.020833334
      %v981 = vmul.f32 %v971, 0.020833334
      %v982 = vmul.f32 %v972, 0.020833334
      %v983 = vmul.f32 %v973, 0.020833334
      %v984 = vmul.f32 %v974, 0.020833334
      %v985 = vmul.f32 %v975, 0.020833334
      %v986 = vmul.f32 %v976, 0.020833334
      %v987 = vmul.f32 %v977, 0.020833334
      %988 = vst.msk [vmem:[%s135] sm:$0xff] %vm322, %v978
      %vm989 = vcmask 57344
      %990 = vst.msk [vmem:[%s135 + $0x8] sm:$0x1] %vm989, %v979
      %991 = vst.msk [vmem:[%s135 + $0x10] sm:$0xff] %vm322, %v980
      %992 = vst.msk [vmem:[%s135 + $0x18] sm:$0x1] %vm989, %v981
      %993 = vst.msk [vmem:[%s135 + $0x20] sm:$0xff] %vm322, %v982
      %994 = vst.msk [vmem:[%s135 + $0x28] sm:$0x1] %vm989, %v983
      %995 = vst.msk [vmem:[%s135 + $0x30] sm:$0xff] %vm322, %v984
      %996 = vst.msk [vmem:[%s135 + $0x38] sm:$0x1] %vm989, %v985
      %997 = vst.msk [vmem:[%s135 + $0x40] sm:$0xff] %vm322, %v986
      %998 = vst.msk [vmem:[%s135 + $0x48] sm:$0x1] %vm989, %v987
      %s999 = smul.u32 5, %s17
      %p1000 = scmp.lt.s32.totalorder %s999, 9
      %s1001 = scalar_select %p1000, %s999, 9
      %p1002 = scmp.lt.s32.totalorder %s16, 0
      %s1003 = scalar_select %p1002, %s16, 0
      %s1004 = smul.addr %s1001, 2
      %s1005 = sadd.s32 %s1003, %s1004
      %s1006 = smul.addr %s1005, 8
      %s1007 = scalar_lea.vmem %s1, %s1006
      // Predicated region
      $region33: #{avg_pool2d.1} parent=23 // pred_check
        %p1008 = pneg %p70
      $region34: #{avg_pool2d.1} parent=23 // pred_check_branch
        %1010 = sbr.rel (%p1008) target = $region36
      $region35: #{avg_pool2d.1} parent=23 // pred_region
        %s1011 = smul.u32 5, %s17
      $region36: #{avg_pool2d.1} parent=23 // pred_fallthru
        _
    $region24: #{avg_pool2d.1} parent=5 // pred_fallthru
      _
    %p1012 = scmp.le.s32.totalorder 2, %s7
    // Predicated region
    $region37: #{avg_pool2d.1} parent=5 // pred_check
      %p1013 = pneg %p1012
    $region38: #{avg_pool2d.1} parent=5 // pred_check_branch
      %1015 = sbr.rel (%p1013) target = $region40
    $region39: #{avg_pool2d.1} parent=5 // pred_region
      %s1016 = ssub.s32 %s7, 2
      // Predicated region
      $region41: #{avg_pool2d.1} parent=39 // pred_check
        %p1017 = pneg %p76
      $region42: #{avg_pool2d.1} parent=39 // pred_check_branch
        %1019 = sbr.rel (%p1017) target = $region44
      $region43: #{avg_pool2d.1} parent=39 // pred_region
        %s1020 = smul.u32 5, %s19
        %p1021 = scmp.lt.s32.totalorder %s1020, 9
        %s1022 = scalar_select %p1021, %s1020, 9
        %p1023 = scmp.lt.s32.totalorder %s18, 0
        %s1024 = scalar_select %p1023, %s18, 0
        %s1025 = smul.addr %s1022, 2
        %s1026 = sadd.s32 %s1024, %s1025
        %s1027 = smul.addr %s1026, 8
        %s1028 = scalar_lea.vmem %s1, %s1027
      $region44: #{avg_pool2d.1} parent=39 // pred_fallthru
        _
    $region40: #{avg_pool2d.1} parent=5 // pred_fallthru
      _
  $region6: #{avg_pool2d.1} parent=0 // loop_footer
    %s11 = sadd.s32 1, %s7
  $region7: #{avg_pool2d.1} parent=0 // loop_footer_branch
    %6 = sbr.rel target = $region3
  $region8: #{avg_pool2d.1} parent=0 // loop_exit
    _

</llo_original>
